<compile_context>
chip_gen: v6e
topology: v6e:2x2x1
jax: 0.10.0
libtpu: 0.0.40
codegen_flags: <defaults>
</compile_context>

<pallas_src>
import functools
import math

import jax
import jax.numpy as jnp
from jax import lax
from jax.experimental import pallas as pl
from jax.experimental.pallas import tpu as pltpu

LN_EPS = 1e-5  # PyTorch default eps for nn.LayerNorm / TransformerEncoderLayer


def _layernorm(x, gamma, beta):
    mean = jnp.mean(x, axis=-1, keepdims=True)
    var = jnp.mean((x - mean) ** 2, axis=-1, keepdims=True)
    return (x - mean) * lax.rsqrt(var + LN_EPS) * gamma + beta


# --------------------------------------------------------------------------- #
# Fused kernel: position-embedding + LayerNorm + post-norm encoder layer.
# Tile layout: native (B, S_BLK, H); all heavy ops on the flat (rows, H) view.
# --------------------------------------------------------------------------- #
def encoder_kernel(nhead,
                   x_ref, pos_ref,
                   pe_g_ref, pe_b_ref,
                   wqkv_ref, bqkv_ref,
                   wo_ref, bo_ref,
                   g1_ref, b1_ref,
                   w1_ref, fb1_ref, w2_ref, fb2_ref,
                   g2_ref, b2_ref,
                   o_ref):
    B, S_t, H = x_ref.shape
    hd = H // nhead
    rows = B * S_t
    scale = 1.0 / math.sqrt(hd)

    # ---- 1) position embedding + LayerNorm ----
    # TODO(synk): dropout (p=trans_drop_prob) treated as identity (inference mode).
    e = x_ref[...] + pos_ref[...][None, :, :]                    # (B, S_t, H)
    src = _layernorm(e.reshape(rows, H), pe_g_ref[...], pe_b_ref[...])   # rows = b*S_t + s

    # ---- 2) fused QKV projection: one bf16 MXU matmul, f32 accumulation ----
    qkv = jnp.dot(src.astype(jnp.bfloat16), wqkv_ref[...],
                  preferred_element_type=jnp.float32) + bqkv_ref[...]    # (rows, 3H)

    # ---- 3) multi-head self-attention over the batch dim B (batch_first=False quirk),
    #         independent per sequence position s.  B is small, so scores/contexts are
    #         VPU broadcast-multiply + reduce (no f32 MXU traffic, no relayouts); the
    #         per-head output projection (bf16 MXU) is fused into the loop. ----
    attn = jnp.zeros((rows, H), jnp.float32)
    for h in range(nhead):
        q_h = qkv[:, h * hd:(h + 1) * hd].reshape(B, S_t, hd)
        k_h = qkv[:, H + h * hd:H + (h + 1) * hd].reshape(B, S_t, hd)
        v_h = qkv[:, 2 * H + h * hd:2 * H + (h + 1) * hd].reshape(B, S_t, hd)

        # scores[a, b, s] = (q[a, s] . k[b, s]) / sqrt(hd)
        s4 = jnp.sum(q_h[:, None] * k_h[None, :], axis=-1, keepdims=True) * scale  # (B,B,S_t,1)
        m = jnp.max(s4, axis=1, keepdims=True)
        p = jnp.exp(s4 - m)
        p = p * pl.reciprocal(jnp.sum(p, axis=1, keepdims=True), approx=True)
        ctx_h = jnp.sum(p * v_h[None, :, :, :], axis=1)                            # (B,S_t,hd)

        # fused output projection for this head: attn += ctx_h @ Wo[h]
        attn = attn + jnp.dot(ctx_h.reshape(rows, hd).astype(jnp.bfloat16),
                              wo_ref[h], preferred_element_type=jnp.float32)
    attn = attn + bo_ref[...]

    # ---- 4) residual + LayerNorm1 (post-norm) ----
    a1 = _layernorm(src + attn, g1_ref[...], b1_ref[...])

    # ---- 5) feed-forward (relu) + residual + LayerNorm2 ----
    hid = jnp.maximum(
        jnp.dot(a1.astype(jnp.bfloat16), w1_ref[...],
                preferred_element_type=jnp.float32) + fb1_ref[...], 0.0)
    ffn = jnp.dot(hid.astype(jnp.bfloat16), w2_ref[...],
                  preferred_element_type=jnp.float32) + fb2_ref[...]
    a2 = _layernorm(a1 + ffn, g2_ref[...], b2_ref[...])

    o_ref[...] = a2.reshape(B, S_t, H)


# --------------------------------------------------------------------------- #
# Parameter init (PyTorch layout) and one-time packing into kernel layout
# --------------------------------------------------------------------------- #
def init_params(key, config):
    H = config['trans_hidden']
    FF = config['trans_feedforward']
    MP = config['trans_max_pos']
    ks = jax.random.split(key, 8)

    def rnd(k, shape, scale=0.1):
        return (scale * jax.random.normal(k, shape)).astype(jnp.float32)

    return {
        'pos_emb': rnd(ks[0], (MP, H), 1.0),
        'pe_gamma': jnp.ones((1, H), jnp.float32),
        'pe_beta': jnp.zeros((1, H), jnp.float32),
        'in_proj_w': rnd(ks[1], (3 * H, H)),     # PyTorch MHA in_proj (out, in)
        'in_proj_b': rnd(ks[2], (3 * H,)),
        'out_proj_w': rnd(ks[3], (H, H)),
        'out_proj_b': jnp.zeros((H,), jnp.float32),
        'ln1_gamma': jnp.ones((1, H), jnp.float32),
        'ln1_beta': jnp.zeros((1, H), jnp.float32),
        'ln2_gamma': jnp.ones((1, H), jnp.float32),
        'ln2_beta': jnp.zeros((1, H), jnp.float32),
        'lin1_w': rnd(ks[4], (FF, H)),
        'lin1_b': rnd(ks[5], (FF,)),
        'lin2_w': rnd(ks[6], (H, FF)),
        'lin2_b': rnd(ks[7], (H,)),
    }


def pack_params(p, config):
    """One-time packing (outside the hot path): transpose / split / bf16 matmul weights."""
    H = p['out_proj_w'].shape[0]
    nhead = config['trans_num_head']
    hd = H // nhead
    # NOTE: on v7x the matmul weights could be fp8 for 2x MXU rate; kept bf16 so the
    # same packing is valid on v5e/v6e.
    return {
        'pos_emb': p['pos_emb'],
        'pe_g': p['pe_gamma'], 'pe_b': p['pe_beta'],
        'wqkv': jnp.asarray(p['in_proj_w'].T, jnp.bfloat16),                 # (H, 3H) cols [q|k|v]
        'bqkv': p['in_proj_b'].reshape(1, 3 * H),
        'wo': jnp.asarray(p['out_proj_w'].T.reshape(nhead, hd, H), jnp.bfloat16),  # per-head out-proj
        'bo': p['out_proj_b'].reshape(1, H),
        'ln1_g': p['ln1_gamma'], 'ln1_b': p['ln1_beta'],
        'ln2_g': p['ln2_gamma'], 'ln2_b': p['ln2_beta'],
        'w1': jnp.asarray(p['lin1_w'].T, jnp.bfloat16),                      # (H, FF)
        'b1': p['lin1_b'].reshape(1, -1),
        'w2': jnp.asarray(p['lin2_w'].T, jnp.bfloat16),                      # (FF, H)
        'b2': p['lin2_b'].reshape(1, H),
    }


# --------------------------------------------------------------------------- #
# Tiling policy: real VMEM budget, minimal padding, >=2 parallel steps when possible
# --------------------------------------------------------------------------- #
def _choose_tiling(S, B, H, FF, nhead, weight_bytes):
    try:
        cap = int(pltpu.get_tpu_info().vmem_capacity_bytes)
    except Exception:
        cap = 64 * 1024 * 1024          # v7x-safe fallback
    budget = (cap * 3) // 4             # headroom for compiler temporaries
    hd = H // nhead

    def _ceil(a, b):
        return -(-a // b)

    def est(blk):
        rows = B * blk
        stream = 2 * 4 * (2 * B * blk * H + blk * H)     # double-buffered x/out/pos tiles (f32)
        acts = 4 * rows * (8 * H + 2 * FF)               # f32 kernel intermediates
        attn_tmp = 2 * 4 * B * B * blk * (hd + 4)        # broadcast score/context products
        return 2 * weight_bytes + stream + acts + attn_tmp

    # >=2 grid steps whenever S allows (v7x megacore); then the smallest 8-aligned block
    # covering S in that many steps (minimal padding, largest legal tile).
    steps = 1 if S < 16 else 2
    blk = max(8, _ceil(_ceil(S, steps), 8) * 8)
    while est(blk) > budget and blk > 8:
        steps += 1
        blk = max(8, _ceil(_ceil(S, steps), 8) * 8)

    vmem_limit = max(32 * 1024 * 1024, min(budget, 128 * 1024 * 1024))
    vmem_limit = min(vmem_limit, cap)
    return blk, vmem_limit


# --------------------------------------------------------------------------- #
# Wrapper
# --------------------------------------------------------------------------- #
def transformer_encoder_forward(x, packed, config):
    B, S, H = x.shape
    nhead = config['trans_num_head']
    FF = config['trans_feedforward']
    assert H % nhead == 0
    assert S <= config['trans_max_pos'], "sequence longer than trans_max_pos"

    weight_bytes = sum(math.prod(v.shape) * jnp.dtype(v.dtype).itemsize
                       for k, v in packed.items() if k != 'pos_emb')
    S_BLK, vmem_limit = _choose_tiling(S, B, H, FF, nhead, weight_bytes)
    n_steps = pl.cdiv(S, S_BLK)
    S_pad = n_steps * S_BLK

    # Pad the sequence axis if needed: attention attends over B (never over S), so the
    # padded positions are fully independent and simply sliced off afterwards.
    pos = packed['pos_emb'][:S]
    if S_pad != S:
        x = jnp.pad(x, ((0, 0), (0, S_pad - S), (0, 0)))
        pos = jnp.pad(pos, ((0, S_pad - S), (0, 0)))

    rows_total = B * S_pad
    flops = (2 * rows_total * H * (3 * H)        # QKV
             + 2 * rows_total * H * H            # out-proj (summed over heads)
             + 4 * rows_total * H * FF           # FFN (two matmuls)
             + 4 * rows_total * B * H)           # attention scores + contexts
    transcendentals = rows_total * (3 + nhead * B)          # LN rsqrt + softmax exp
    bytes_accessed = 4 * (2 * rows_total * H + S_pad * H) + weight_bytes

    def const_spec(a):
        nd = a.ndim
        return pl.BlockSpec(a.shape, lambda i, _nd=nd: (0,) * _nd)

    x_spec = pl.BlockSpec((B, S_BLK, H), lambda i: (0, i, 0))   # native layout, no transposes
    pos_spec = pl.BlockSpec((S_BLK, H), lambda i: (i, 0))

    kernel = functools.partial(encoder_kernel, nhead)
    out = pl.pallas_call(
        kernel,
        out_shape=jax.ShapeDtypeStruct((B, S_pad, H), jnp.float32),
        grid=(n_steps,),
        in_specs=[
            x_spec, pos_spec,
            const_spec(packed['pe_g']), const_spec(packed['pe_b']),
            const_spec(packed['wqkv']), const_spec(packed['bqkv']),
            const_spec(packed['wo']), const_spec(packed['bo']),
            const_spec(packed['ln1_g']), const_spec(packed['ln1_b']),
            const_spec(packed['w1']), const_spec(packed['b1']),
            const_spec(packed['w2']), const_spec(packed['b2']),
            const_spec(packed['ln2_g']), const_spec(packed['ln2_b']),
        ],
        out_specs=x_spec,
        compiler_params=pltpu.CompilerParams(
            dimension_semantics=("parallel",),
            vmem_limit_bytes=int(vmem_limit)),
        cost_estimate=pl.CostEstimate(
            flops=int(flops),
            transcendentals=int(transcendentals),
            bytes_accessed=int(bytes_accessed)),
    )(x, pos,
      packed['pe_g'], packed['pe_b'],
      packed['wqkv'], packed['bqkv'],
      packed['wo'], packed['bo'],
      packed['ln1_g'], packed['ln1_b'],
      packed['w1'], packed['b1'],
      packed['w2'], packed['b2'],
      packed['ln2_g'], packed['ln2_b'])

    return out[:, :S, :] if S_pad != S else out


# --------------------------------------------------------------------------- #
# Pure-JAX reference (mirrors PyTorch semantics) for a correctness check
# --------------------------------------------------------------------------- #
def reference_forward(x, packed, config):
    B, S, H = x.shape
    nhead = config['trans_num_head']
    hd = H // nhead

    def ln(v, g, b):
        m = jnp.mean(v, -1, keepdims=True)
        var = jnp.mean((v - m) ** 2, -1, keepdims=True)
        return (v - m) * lax.rsqrt(var + LN_EPS) * g + b

    wqkv = packed['wqkv'].astype(jnp.float32)
    wo = packed['wo'].astype(jnp.float32).reshape(H, H)
    w1 = packed['w1'].astype(jnp.float32)
    w2 = packed['w2'].astype(jnp.float32)

    src = ln(x + packed['pos_emb'][:S][None], packed['pe_g'], packed['pe_b'])
    qkv = src @ wqkv + packed['bqkv']
    q, k, v = qkv[..., :H], qkv[..., H:2 * H], qkv[..., 2 * H:]
    ctx = []
    for h in range(nhead):
        sl = slice(h * hd, (h + 1) * hd)
        s_ = jnp.einsum('asd,bsd->sab', q[..., sl], k[..., sl]) / math.sqrt(hd)
        p = jax.nn.softmax(s_, axis=-1)
        ctx.append(jnp.einsum('sab,bsd->asd', p, v[..., sl]))
    attn = jnp.concatenate(ctx, axis=-1) @ wo + packed['bo']
    a1 = ln(src + attn, packed['ln1_g'], packed['ln1_b'])
    ffn = jnp.maximum(a1 @ w1 + packed['b1'], 0.0) @ w2 + packed['b2']
    return ln(a1 + ffn, packed['ln2_g'], packed['ln2_b'])


if __name__ == "__main__":
    config = {
        'trans_max_pos': 16,
        'trans_hidden': 32,
        'trans_num_head': 4,
        'trans_feedforward': 64,
        'trans_drop_prob': 0.1,   # identity at inference
        'trans_act_func': 'relu',
        'trans_num_layer': 2,     # unused: forward() applies self.encoder_layer once
    }
    B, S, H = 2, 8, config['trans_hidden']

    key = jax.random.PRNGKey(0)
    k_x, k_p = jax.random.split(key)
    x = jax.random.normal(k_x, (B, S, H), dtype=jnp.float32)
    params = init_params(k_p, config)
    packed = pack_params(params, config)          # one-time weight packing (not per call)

    fwd = jax.jit(functools.partial(transformer_encoder_forward, config=config))
    out = jax.block_until_ready(fwd(x, packed))
    ref = reference_forward(x, packed, config)

    assert out.shape == (B, S, H)
    assert bool(jnp.all(jnp.isfinite(out)))
    assert bool(jnp.allclose(out, ref, atol=5e-2, rtol=5e-2)), \
        float(jnp.max(jnp.abs(out - ref)))
    print("KERNEL_OK")
</pallas_src>

<mosaic_0001>
module attributes {stable_mosaic.version = 11 : i64} {
  func.func @encoder_kernel(%arg0: i32, %arg1: memref<2x8x32xf32, #tpu.memory_space<vmem>>, %arg2: memref<8x32xf32, #tpu.memory_space<vmem>>, %arg3: memref<1x32xf32, #tpu.memory_space<vmem>>, %arg4: memref<1x32xf32, #tpu.memory_space<vmem>>, %arg5: memref<32x96xbf16, #tpu.memory_space<vmem>>, %arg6: memref<1x96xf32, #tpu.memory_space<vmem>>, %arg7: memref<4x8x32xbf16, #tpu.memory_space<vmem>>, %arg8: memref<1x32xf32, #tpu.memory_space<vmem>>, %arg9: memref<1x32xf32, #tpu.memory_space<vmem>>, %arg10: memref<1x32xf32, #tpu.memory_space<vmem>>, %arg11: memref<32x64xbf16, #tpu.memory_space<vmem>>, %arg12: memref<1x64xf32, #tpu.memory_space<vmem>>, %arg13: memref<64x32xbf16, #tpu.memory_space<vmem>>, %arg14: memref<1x32xf32, #tpu.memory_space<vmem>>, %arg15: memref<1x32xf32, #tpu.memory_space<vmem>>, %arg16: memref<1x32xf32, #tpu.memory_space<vmem>>, %arg17: memref<2x8x32xf32, #tpu.memory_space<vmem>>) attributes {dimension_semantics = [#tpu.dimension_semantics<parallel>], iteration_bounds = array<i64: 1>, scalar_prefetch = 0 : i64, scratch_operands = 0 : i64, tpu.core_type = #tpu.core_type<tc>, window_params = [{transform_indices = @transform_0, window_bounds = array<i64: 2, 8, 32>}, {transform_indices = @transform_1, window_bounds = array<i64: 8, 32>}, {pipeline_mode = #tpu.pipeline_mode<synchronous>, transform_indices = @transform_2, window_bounds = array<i64: 1, 32>}, {pipeline_mode = #tpu.pipeline_mode<synchronous>, transform_indices = @transform_3, window_bounds = array<i64: 1, 32>}, {pipeline_mode = #tpu.pipeline_mode<synchronous>, transform_indices = @transform_4, window_bounds = array<i64: 32, 96>}, {pipeline_mode = #tpu.pipeline_mode<synchronous>, transform_indices = @transform_5, window_bounds = array<i64: 1, 96>}, {pipeline_mode = #tpu.pipeline_mode<synchronous>, transform_indices = @transform_6, window_bounds = array<i64: 4, 8, 32>}, {pipeline_mode = #tpu.pipeline_mode<synchronous>, transform_indices = @transform_7, window_bounds = array<i64: 1, 32>}, {pipeline_mode = #tpu.pipeline_mode<synchronous>, transform_indices = @transform_8, window_bounds = array<i64: 1, 32>}, {pipeline_mode = #tpu.pipeline_mode<synchronous>, transform_indices = @transform_9, window_bounds = array<i64: 1, 32>}, {pipeline_mode = #tpu.pipeline_mode<synchronous>, transform_indices = @transform_10, window_bounds = array<i64: 32, 64>}, {pipeline_mode = #tpu.pipeline_mode<synchronous>, transform_indices = @transform_11, window_bounds = array<i64: 1, 64>}, {pipeline_mode = #tpu.pipeline_mode<synchronous>, transform_indices = @transform_12, window_bounds = array<i64: 64, 32>}, {pipeline_mode = #tpu.pipeline_mode<synchronous>, transform_indices = @transform_13, window_bounds = array<i64: 1, 32>}, {pipeline_mode = #tpu.pipeline_mode<synchronous>, transform_indices = @transform_14, window_bounds = array<i64: 1, 32>}, {pipeline_mode = #tpu.pipeline_mode<synchronous>, transform_indices = @transform_15, window_bounds = array<i64: 1, 32>}, {transform_indices = @transform_16, window_bounds = array<i64: 2, 8, 32>}]} {
    %c0 = arith.constant 0 : index
    %c0_0 = arith.constant 0 : index
    %c0_1 = arith.constant 0 : index
    %0 = vector.load %arg1[%c0, %c0_0, %c0_1] : memref<2x8x32xf32, #tpu.memory_space<vmem>>, vector<2x8x32xf32>
    %c0_2 = arith.constant 0 : index
    %c0_3 = arith.constant 0 : index
    %1 = vector.load %arg2[%c0_2, %c0_3] : memref<8x32xf32, #tpu.memory_space<vmem>>, vector<8x32xf32>
    %2 = vector.shape_cast %1 : vector<8x32xf32> to vector<1x8x32xf32>
    %3 = vector.broadcast %2 : vector<1x8x32xf32> to vector<2x8x32xf32>
    %4 = arith.addf %0, %3 : vector<2x8x32xf32>
    %5 = vector.shape_cast %4 : vector<2x8x32xf32> to vector<16x32xf32>
    %c0_4 = arith.constant 0 : index
    %c0_5 = arith.constant 0 : index
    %6 = vector.load %arg3[%c0_4, %c0_5] : memref<1x32xf32, #tpu.memory_space<vmem>>, vector<1x32xf32>
    %c0_6 = arith.constant 0 : index
    %c0_7 = arith.constant 0 : index
    %7 = vector.load %arg4[%c0_6, %c0_7] : memref<1x32xf32, #tpu.memory_space<vmem>>, vector<1x32xf32>
    %cst = arith.constant dense<0.000000e+00> : vector<16xf32>
    %8 = vector.multi_reduction <add>, %5, %cst [1] : vector<16x32xf32> to vector<16xf32>
    %9 = vector.shape_cast %8 : vector<16xf32> to vector<16x1xf32>
    %cst_8 = arith.constant 3.200000e+01 : f32
    %10 = vector.broadcast %cst_8 : f32 to vector<16x1xf32>
    %11 = arith.divf %9, %10 : vector<16x1xf32>
    %12 = vector.broadcast %11 : vector<16x1xf32> to vector<16x32xf32>
    %13 = arith.subf %5, %12 : vector<16x32xf32>
    %14 = arith.mulf %13, %13 : vector<16x32xf32>
    %cst_9 = arith.constant dense<0.000000e+00> : vector<16xf32>
    %15 = vector.multi_reduction <add>, %14, %cst_9 [1] : vector<16x32xf32> to vector<16xf32>
    %16 = vector.shape_cast %15 : vector<16xf32> to vector<16x1xf32>
    %cst_10 = arith.constant 3.200000e+01 : f32
    %17 = vector.broadcast %cst_10 : f32 to vector<16x1xf32>
    %18 = arith.divf %16, %17 : vector<16x1xf32>
    %19 = vector.broadcast %11 : vector<16x1xf32> to vector<16x32xf32>
    %20 = arith.subf %5, %19 : vector<16x32xf32>
    %cst_11 = arith.constant 9.99999974E-6 : f32
    %21 = vector.broadcast %cst_11 : f32 to vector<16x1xf32>
    %22 = arith.addf %18, %21 : vector<16x1xf32>
    %23 = math.rsqrt %22 : vector<16x1xf32>
    %24 = vector.broadcast %23 : vector<16x1xf32> to vector<16x32xf32>
    %25 = arith.mulf %20, %24 : vector<16x32xf32>
    %26 = vector.broadcast %6 : vector<1x32xf32> to vector<16x32xf32>
    %27 = arith.mulf %25, %26 : vector<16x32xf32>
    %28 = vector.broadcast %7 : vector<1x32xf32> to vector<16x32xf32>
    %29 = arith.addf %27, %28 : vector<16x32xf32>
    %30 = arith.truncf %29 : vector<16x32xf32> to vector<16x32xbf16>
    %c0_12 = arith.constant 0 : index
    %c0_13 = arith.constant 0 : index
    %31 = vector.load %arg5[%c0_12, %c0_13] : memref<32x96xbf16, #tpu.memory_space<vmem>>, vector<32x96xbf16>
    %cst_14 = arith.constant dense<0.000000e+00> : vector<16x96xf32>
    %32 = tpu.matmul %30, %31, %cst_14 {dimension_numbers = #tpu.dot_dimension_numbers<[1], [0], [0], [1], [0, 0, 1, 1], [], []>} : vector<16x32xbf16>, vector<32x96xbf16>, vector<16x96xf32> -> vector<16x96xf32>
    %c0_15 = arith.constant 0 : index
    %c0_16 = arith.constant 0 : index
    %33 = vector.load %arg6[%c0_15, %c0_16] : memref<1x96xf32, #tpu.memory_space<vmem>>, vector<1x96xf32>
    %34 = vector.broadcast %33 : vector<1x96xf32> to vector<16x96xf32>
    %35 = arith.addf %32, %34 : vector<16x96xf32>
    %cst_17 = arith.constant 0.000000e+00 : f32
    %36 = vector.broadcast %cst_17 : f32 to vector<16x32xf32>
    %37 = vector.extract_strided_slice %35 {offsets = [0, 0], sizes = [16, 8], strides = [1, 1]} : vector<16x96xf32> to vector<16x8xf32>
    %38 = vector.shape_cast %37 : vector<16x8xf32> to vector<2x8x8xf32>
    %39 = vector.extract_strided_slice %35 {offsets = [0, 32], sizes = [16, 8], strides = [1, 1]} : vector<16x96xf32> to vector<16x8xf32>
    %40 = vector.shape_cast %39 : vector<16x8xf32> to vector<2x8x8xf32>
    %41 = vector.extract_strided_slice %35 {offsets = [0, 64], sizes = [16, 8], strides = [1, 1]} : vector<16x96xf32> to vector<16x8xf32>
    %42 = vector.shape_cast %41 : vector<16x8xf32> to vector<2x8x8xf32>
    %43 = vector.shape_cast %38 : vector<2x8x8xf32> to vector<2x1x8x8xf32>
    %44 = vector.shape_cast %40 : vector<2x8x8xf32> to vector<1x2x8x8xf32>
    %45 = vector.broadcast %43 : vector<2x1x8x8xf32> to vector<2x2x8x8xf32>
    %46 = vector.broadcast %44 : vector<1x2x8x8xf32> to vector<2x2x8x8xf32>
    %47 = arith.mulf %45, %46 : vector<2x2x8x8xf32>
    %cst_18 = arith.constant dense<0.000000e+00> : vector<2x2x8xf32>
    %48 = vector.multi_reduction <add>, %47, %cst_18 [3] : vector<2x2x8x8xf32> to vector<2x2x8xf32>
    %49 = vector.shape_cast %48 : vector<2x2x8xf32> to vector<2x2x8x1xf32>
    %cst_19 = arith.constant 0.353553385 : f32
    %50 = vector.broadcast %cst_19 : f32 to vector<2x2x8x1xf32>
    %51 = arith.mulf %49, %50 : vector<2x2x8x1xf32>
    %cst_20 = arith.constant dense<0xFF800000> : vector<2x8x1xf32>
    %52 = vector.multi_reduction <maximumf>, %51, %cst_20 [1] : vector<2x2x8x1xf32> to vector<2x8x1xf32>
    %53 = vector.shape_cast %52 : vector<2x8x1xf32> to vector<2x1x8x1xf32>
    %54 = vector.broadcast %53 : vector<2x1x8x1xf32> to vector<2x2x8x1xf32>
    %55 = arith.subf %51, %54 : vector<2x2x8x1xf32>
    %56 = math.exp %55 : vector<2x2x8x1xf32>
    %cst_21 = arith.constant dense<0.000000e+00> : vector<2x8x1xf32>
    %57 = vector.multi_reduction <add>, %56, %cst_21 [1] : vector<2x2x8x1xf32> to vector<2x8x1xf32>
    %58 = vector.shape_cast %57 : vector<2x8x1xf32> to vector<2x1x8x1xf32>
    %59 = tpu.reciprocal %58 {approx = true} : vector<2x1x8x1xf32> -> vector<2x1x8x1xf32>
    %60 = vector.broadcast %59 : vector<2x1x8x1xf32> to vector<2x2x8x1xf32>
    %61 = arith.mulf %56, %60 : vector<2x2x8x1xf32>
    %62 = vector.shape_cast %42 : vector<2x8x8xf32> to vector<1x2x8x8xf32>
    %63 = vector.broadcast %61 : vector<2x2x8x1xf32> to vector<2x2x8x8xf32>
    %64 = vector.broadcast %62 : vector<1x2x8x8xf32> to vector<2x2x8x8xf32>
    %65 = arith.mulf %63, %64 : vector<2x2x8x8xf32>
    %cst_22 = arith.constant dense<0.000000e+00> : vector<2x8x8xf32>
    %66 = vector.multi_reduction <add>, %65, %cst_22 [1] : vector<2x2x8x8xf32> to vector<2x8x8xf32>
    %67 = vector.shape_cast %66 : vector<2x8x8xf32> to vector<16x8xf32>
    %68 = arith.truncf %67 : vector<16x8xf32> to vector<16x8xbf16>
    %c0_23 = arith.constant 0 : index
    %c0_24 = arith.constant 0 : index
    %c0_25 = arith.constant 0 : index
    %69 = vector.load %arg7[%c0_23, %c0_24, %c0_25] : memref<4x8x32xbf16, #tpu.memory_space<vmem>>, vector<1x8x32xbf16>
    %70 = vector.shape_cast %69 : vector<1x8x32xbf16> to vector<8x32xbf16>
    %cst_26 = arith.constant dense<0.000000e+00> : vector<16x32xf32>
    %71 = tpu.matmul %68, %70, %cst_26 {dimension_numbers = #tpu.dot_dimension_numbers<[1], [0], [0], [1], [0, 0, 1, 1], [], []>} : vector<16x8xbf16>, vector<8x32xbf16>, vector<16x32xf32> -> vector<16x32xf32>
    %72 = arith.addf %36, %71 : vector<16x32xf32>
    %73 = vector.extract_strided_slice %35 {offsets = [0, 8], sizes = [16, 8], strides = [1, 1]} : vector<16x96xf32> to vector<16x8xf32>
    %74 = vector.shape_cast %73 : vector<16x8xf32> to vector<2x8x8xf32>
    %75 = vector.extract_strided_slice %35 {offsets = [0, 40], sizes = [16, 8], strides = [1, 1]} : vector<16x96xf32> to vector<16x8xf32>
    %76 = vector.shape_cast %75 : vector<16x8xf32> to vector<2x8x8xf32>
    %77 = vector.extract_strided_slice %35 {offsets = [0, 72], sizes = [16, 8], strides = [1, 1]} : vector<16x96xf32> to vector<16x8xf32>
    %78 = vector.shape_cast %77 : vector<16x8xf32> to vector<2x8x8xf32>
    %79 = vector.shape_cast %74 : vector<2x8x8xf32> to vector<2x1x8x8xf32>
    %80 = vector.shape_cast %76 : vector<2x8x8xf32> to vector<1x2x8x8xf32>
    %81 = vector.broadcast %79 : vector<2x1x8x8xf32> to vector<2x2x8x8xf32>
    %82 = vector.broadcast %80 : vector<1x2x8x8xf32> to vector<2x2x8x8xf32>
    %83 = arith.mulf %81, %82 : vector<2x2x8x8xf32>
    %cst_27 = arith.constant dense<0.000000e+00> : vector<2x2x8xf32>
    %84 = vector.multi_reduction <add>, %83, %cst_27 [3] : vector<2x2x8x8xf32> to vector<2x2x8xf32>
    %85 = vector.shape_cast %84 : vector<2x2x8xf32> to vector<2x2x8x1xf32>
    %cst_28 = arith.constant 0.353553385 : f32
    %86 = vector.broadcast %cst_28 : f32 to vector<2x2x8x1xf32>
    %87 = arith.mulf %85, %86 : vector<2x2x8x1xf32>
    %cst_29 = arith.constant dense<0xFF800000> : vector<2x8x1xf32>
    %88 = vector.multi_reduction <maximumf>, %87, %cst_29 [1] : vector<2x2x8x1xf32> to vector<2x8x1xf32>
    %89 = vector.shape_cast %88 : vector<2x8x1xf32> to vector<2x1x8x1xf32>
    %90 = vector.broadcast %89 : vector<2x1x8x1xf32> to vector<2x2x8x1xf32>
    %91 = arith.subf %87, %90 : vector<2x2x8x1xf32>
    %92 = math.exp %91 : vector<2x2x8x1xf32>
    %cst_30 = arith.constant dense<0.000000e+00> : vector<2x8x1xf32>
    %93 = vector.multi_reduction <add>, %92, %cst_30 [1] : vector<2x2x8x1xf32> to vector<2x8x1xf32>
    %94 = vector.shape_cast %93 : vector<2x8x1xf32> to vector<2x1x8x1xf32>
    %95 = tpu.reciprocal %94 {approx = true} : vector<2x1x8x1xf32> -> vector<2x1x8x1xf32>
    %96 = vector.broadcast %95 : vector<2x1x8x1xf32> to vector<2x2x8x1xf32>
    %97 = arith.mulf %92, %96 : vector<2x2x8x1xf32>
    %98 = vector.shape_cast %78 : vector<2x8x8xf32> to vector<1x2x8x8xf32>
    %99 = vector.broadcast %97 : vector<2x2x8x1xf32> to vector<2x2x8x8xf32>
    %100 = vector.broadcast %98 : vector<1x2x8x8xf32> to vector<2x2x8x8xf32>
    %101 = arith.mulf %99, %100 : vector<2x2x8x8xf32>
    %cst_31 = arith.constant dense<0.000000e+00> : vector<2x8x8xf32>
    %102 = vector.multi_reduction <add>, %101, %cst_31 [1] : vector<2x2x8x8xf32> to vector<2x8x8xf32>
    %103 = vector.shape_cast %102 : vector<2x8x8xf32> to vector<16x8xf32>
    %104 = arith.truncf %103 : vector<16x8xf32> to vector<16x8xbf16>
    %c1 = arith.constant 1 : index
    %c0_32 = arith.constant 0 : index
    %c0_33 = arith.constant 0 : index
    %105 = vector.load %arg7[%c1, %c0_32, %c0_33] : memref<4x8x32xbf16, #tpu.memory_space<vmem>>, vector<1x8x32xbf16>
    %106 = vector.shape_cast %105 : vector<1x8x32xbf16> to vector<8x32xbf16>
    %cst_34 = arith.constant dense<0.000000e+00> : vector<16x32xf32>
    %107 = tpu.matmul %104, %106, %cst_34 {dimension_numbers = #tpu.dot_dimension_numbers<[1], [0], [0], [1], [0, 0, 1, 1], [], []>} : vector<16x8xbf16>, vector<8x32xbf16>, vector<16x32xf32> -> vector<16x32xf32>
    %108 = arith.addf %72, %107 : vector<16x32xf32>
    %109 = vector.extract_strided_slice %35 {offsets = [0, 16], sizes = [16, 8], strides = [1, 1]} : vector<16x96xf32> to vector<16x8xf32>
    %110 = vector.shape_cast %109 : vector<16x8xf32> to vector<2x8x8xf32>
    %111 = vector.extract_strided_slice %35 {offsets = [0, 48], sizes = [16, 8], strides = [1, 1]} : vector<16x96xf32> to vector<16x8xf32>
    %112 = vector.shape_cast %111 : vector<16x8xf32> to vector<2x8x8xf32>
    %113 = vector.extract_strided_slice %35 {offsets = [0, 80], sizes = [16, 8], strides = [1, 1]} : vector<16x96xf32> to vector<16x8xf32>
    %114 = vector.shape_cast %113 : vector<16x8xf32> to vector<2x8x8xf32>
    %115 = vector.shape_cast %110 : vector<2x8x8xf32> to vector<2x1x8x8xf32>
    %116 = vector.shape_cast %112 : vector<2x8x8xf32> to vector<1x2x8x8xf32>
    %117 = vector.broadcast %115 : vector<2x1x8x8xf32> to vector<2x2x8x8xf32>
    %118 = vector.broadcast %116 : vector<1x2x8x8xf32> to vector<2x2x8x8xf32>
    %119 = arith.mulf %117, %118 : vector<2x2x8x8xf32>
    %cst_35 = arith.constant dense<0.000000e+00> : vector<2x2x8xf32>
    %120 = vector.multi_reduction <add>, %119, %cst_35 [3] : vector<2x2x8x8xf32> to vector<2x2x8xf32>
    %121 = vector.shape_cast %120 : vector<2x2x8xf32> to vector<2x2x8x1xf32>
    %cst_36 = arith.constant 0.353553385 : f32
    %122 = vector.broadcast %cst_36 : f32 to vector<2x2x8x1xf32>
    %123 = arith.mulf %121, %122 : vector<2x2x8x1xf32>
    %cst_37 = arith.constant dense<0xFF800000> : vector<2x8x1xf32>
    %124 = vector.multi_reduction <maximumf>, %123, %cst_37 [1] : vector<2x2x8x1xf32> to vector<2x8x1xf32>
    %125 = vector.shape_cast %124 : vector<2x8x1xf32> to vector<2x1x8x1xf32>
    %126 = vector.broadcast %125 : vector<2x1x8x1xf32> to vector<2x2x8x1xf32>
    %127 = arith.subf %123, %126 : vector<2x2x8x1xf32>
    %128 = math.exp %127 : vector<2x2x8x1xf32>
    %cst_38 = arith.constant dense<0.000000e+00> : vector<2x8x1xf32>
    %129 = vector.multi_reduction <add>, %128, %cst_38 [1] : vector<2x2x8x1xf32> to vector<2x8x1xf32>
    %130 = vector.shape_cast %129 : vector<2x8x1xf32> to vector<2x1x8x1xf32>
    %131 = tpu.reciprocal %130 {approx = true} : vector<2x1x8x1xf32> -> vector<2x1x8x1xf32>
    %132 = vector.broadcast %131 : vector<2x1x8x1xf32> to vector<2x2x8x1xf32>
    %133 = arith.mulf %128, %132 : vector<2x2x8x1xf32>
    %134 = vector.shape_cast %114 : vector<2x8x8xf32> to vector<1x2x8x8xf32>
    %135 = vector.broadcast %133 : vector<2x2x8x1xf32> to vector<2x2x8x8xf32>
    %136 = vector.broadcast %134 : vector<1x2x8x8xf32> to vector<2x2x8x8xf32>
    %137 = arith.mulf %135, %136 : vector<2x2x8x8xf32>
    %cst_39 = arith.constant dense<0.000000e+00> : vector<2x8x8xf32>
    %138 = vector.multi_reduction <add>, %137, %cst_39 [1] : vector<2x2x8x8xf32> to vector<2x8x8xf32>
    %139 = vector.shape_cast %138 : vector<2x8x8xf32> to vector<16x8xf32>
    %140 = arith.truncf %139 : vector<16x8xf32> to vector<16x8xbf16>
    %c2 = arith.constant 2 : index
    %c0_40 = arith.constant 0 : index
    %c0_41 = arith.constant 0 : index
    %141 = vector.load %arg7[%c2, %c0_40, %c0_41] : memref<4x8x32xbf16, #tpu.memory_space<vmem>>, vector<1x8x32xbf16>
    %142 = vector.shape_cast %141 : vector<1x8x32xbf16> to vector<8x32xbf16>
    %cst_42 = arith.constant dense<0.000000e+00> : vector<16x32xf32>
    %143 = tpu.matmul %140, %142, %cst_42 {dimension_numbers = #tpu.dot_dimension_numbers<[1], [0], [0], [1], [0, 0, 1, 1], [], []>} : vector<16x8xbf16>, vector<8x32xbf16>, vector<16x32xf32> -> vector<16x32xf32>
    %144 = arith.addf %108, %143 : vector<16x32xf32>
    %145 = vector.extract_strided_slice %35 {offsets = [0, 24], sizes = [16, 8], strides = [1, 1]} : vector<16x96xf32> to vector<16x8xf32>
    %146 = vector.shape_cast %145 : vector<16x8xf32> to vector<2x8x8xf32>
    %147 = vector.extract_strided_slice %35 {offsets = [0, 56], sizes = [16, 8], strides = [1, 1]} : vector<16x96xf32> to vector<16x8xf32>
    %148 = vector.shape_cast %147 : vector<16x8xf32> to vector<2x8x8xf32>
    %149 = vector.extract_strided_slice %35 {offsets = [0, 88], sizes = [16, 8], strides = [1, 1]} : vector<16x96xf32> to vector<16x8xf32>
    %150 = vector.shape_cast %149 : vector<16x8xf32> to vector<2x8x8xf32>
    %151 = vector.shape_cast %146 : vector<2x8x8xf32> to vector<2x1x8x8xf32>
    %152 = vector.shape_cast %148 : vector<2x8x8xf32> to vector<1x2x8x8xf32>
    %153 = vector.broadcast %151 : vector<2x1x8x8xf32> to vector<2x2x8x8xf32>
    %154 = vector.broadcast %152 : vector<1x2x8x8xf32> to vector<2x2x8x8xf32>
    %155 = arith.mulf %153, %154 : vector<2x2x8x8xf32>
    %cst_43 = arith.constant dense<0.000000e+00> : vector<2x2x8xf32>
    %156 = vector.multi_reduction <add>, %155, %cst_43 [3] : vector<2x2x8x8xf32> to vector<2x2x8xf32>
    %157 = vector.shape_cast %156 : vector<2x2x8xf32> to vector<2x2x8x1xf32>
    %cst_44 = arith.constant 0.353553385 : f32
    %158 = vector.broadcast %cst_44 : f32 to vector<2x2x8x1xf32>
    %159 = arith.mulf %157, %158 : vector<2x2x8x1xf32>
    %cst_45 = arith.constant dense<0xFF800000> : vector<2x8x1xf32>
    %160 = vector.multi_reduction <maximumf>, %159, %cst_45 [1] : vector<2x2x8x1xf32> to vector<2x8x1xf32>
    %161 = vector.shape_cast %160 : vector<2x8x1xf32> to vector<2x1x8x1xf32>
    %162 = vector.broadcast %161 : vector<2x1x8x1xf32> to vector<2x2x8x1xf32>
    %163 = arith.subf %159, %162 : vector<2x2x8x1xf32>
    %164 = math.exp %163 : vector<2x2x8x1xf32>
    %cst_46 = arith.constant dense<0.000000e+00> : vector<2x8x1xf32>
    %165 = vector.multi_reduction <add>, %164, %cst_46 [1] : vector<2x2x8x1xf32> to vector<2x8x1xf32>
    %166 = vector.shape_cast %165 : vector<2x8x1xf32> to vector<2x1x8x1xf32>
    %167 = tpu.reciprocal %166 {approx = true} : vector<2x1x8x1xf32> -> vector<2x1x8x1xf32>
    %168 = vector.broadcast %167 : vector<2x1x8x1xf32> to vector<2x2x8x1xf32>
    %169 = arith.mulf %164, %168 : vector<2x2x8x1xf32>
    %170 = vector.shape_cast %150 : vector<2x8x8xf32> to vector<1x2x8x8xf32>
    %171 = vector.broadcast %169 : vector<2x2x8x1xf32> to vector<2x2x8x8xf32>
    %172 = vector.broadcast %170 : vector<1x2x8x8xf32> to vector<2x2x8x8xf32>
    %173 = arith.mulf %171, %172 : vector<2x2x8x8xf32>
    %cst_47 = arith.constant dense<0.000000e+00> : vector<2x8x8xf32>
    %174 = vector.multi_reduction <add>, %173, %cst_47 [1] : vector<2x2x8x8xf32> to vector<2x8x8xf32>
    %175 = vector.shape_cast %174 : vector<2x8x8xf32> to vector<16x8xf32>
    %176 = arith.truncf %175 : vector<16x8xf32> to vector<16x8xbf16>
    %c3 = arith.constant 3 : index
    %c0_48 = arith.constant 0 : index
    %c0_49 = arith.constant 0 : index
    %177 = vector.load %arg7[%c3, %c0_48, %c0_49] : memref<4x8x32xbf16, #tpu.memory_space<vmem>>, vector<1x8x32xbf16>
    %178 = vector.shape_cast %177 : vector<1x8x32xbf16> to vector<8x32xbf16>
    %cst_50 = arith.constant dense<0.000000e+00> : vector<16x32xf32>
    %179 = tpu.matmul %176, %178, %cst_50 {dimension_numbers = #tpu.dot_dimension_numbers<[1], [0], [0], [1], [0, 0, 1, 1], [], []>} : vector<16x8xbf16>, vector<8x32xbf16>, vector<16x32xf32> -> vector<16x32xf32>
    %180 = arith.addf %144, %179 : vector<16x32xf32>
    %c0_51 = arith.constant 0 : index
    %c0_52 = arith.constant 0 : index
    %181 = vector.load %arg8[%c0_51, %c0_52] : memref<1x32xf32, #tpu.memory_space<vmem>>, vector<1x32xf32>
    %182 = vector.broadcast %181 : vector<1x32xf32> to vector<16x32xf32>
    %183 = arith.addf %180, %182 : vector<16x32xf32>
    %184 = arith.addf %29, %183 : vector<16x32xf32>
    %c0_53 = arith.constant 0 : index
    %c0_54 = arith.constant 0 : index
    %185 = vector.load %arg9[%c0_53, %c0_54] : memref<1x32xf32, #tpu.memory_space<vmem>>, vector<1x32xf32>
    %c0_55 = arith.constant 0 : index
    %c0_56 = arith.constant 0 : index
    %186 = vector.load %arg10[%c0_55, %c0_56] : memref<1x32xf32, #tpu.memory_space<vmem>>, vector<1x32xf32>
    %cst_57 = arith.constant dense<0.000000e+00> : vector<16xf32>
    %187 = vector.multi_reduction <add>, %184, %cst_57 [1] : vector<16x32xf32> to vector<16xf32>
    %188 = vector.shape_cast %187 : vector<16xf32> to vector<16x1xf32>
    %cst_58 = arith.constant 3.200000e+01 : f32
    %189 = vector.broadcast %cst_58 : f32 to vector<16x1xf32>
    %190 = arith.divf %188, %189 : vector<16x1xf32>
    %191 = vector.broadcast %190 : vector<16x1xf32> to vector<16x32xf32>
    %192 = arith.subf %184, %191 : vector<16x32xf32>
    %193 = arith.mulf %192, %192 : vector<16x32xf32>
    %cst_59 = arith.constant dense<0.000000e+00> : vector<16xf32>
    %194 = vector.multi_reduction <add>, %193, %cst_59 [1] : vector<16x32xf32> to vector<16xf32>
    %195 = vector.shape_cast %194 : vector<16xf32> to vector<16x1xf32>
    %cst_60 = arith.constant 3.200000e+01 : f32
    %196 = vector.broadcast %cst_60 : f32 to vector<16x1xf32>
    %197 = arith.divf %195, %196 : vector<16x1xf32>
    %198 = vector.broadcast %190 : vector<16x1xf32> to vector<16x32xf32>
    %199 = arith.subf %184, %198 : vector<16x32xf32>
    %cst_61 = arith.constant 9.99999974E-6 : f32
    %200 = vector.broadcast %cst_61 : f32 to vector<16x1xf32>
    %201 = arith.addf %197, %200 : vector<16x1xf32>
    %202 = math.rsqrt %201 : vector<16x1xf32>
    %203 = vector.broadcast %202 : vector<16x1xf32> to vector<16x32xf32>
    %204 = arith.mulf %199, %203 : vector<16x32xf32>
    %205 = vector.broadcast %185 : vector<1x32xf32> to vector<16x32xf32>
    %206 = arith.mulf %204, %205 : vector<16x32xf32>
    %207 = vector.broadcast %186 : vector<1x32xf32> to vector<16x32xf32>
    %208 = arith.addf %206, %207 : vector<16x32xf32>
    %209 = arith.truncf %208 : vector<16x32xf32> to vector<16x32xbf16>
    %c0_62 = arith.constant 0 : index
    %c0_63 = arith.constant 0 : index
    %210 = vector.load %arg11[%c0_62, %c0_63] : memref<32x64xbf16, #tpu.memory_space<vmem>>, vector<32x64xbf16>
    %cst_64 = arith.constant dense<0.000000e+00> : vector<16x64xf32>
    %211 = tpu.matmul %209, %210, %cst_64 {dimension_numbers = #tpu.dot_dimension_numbers<[1], [0], [0], [1], [0, 0, 1, 1], [], []>} : vector<16x32xbf16>, vector<32x64xbf16>, vector<16x64xf32> -> vector<16x64xf32>
    %c0_65 = arith.constant 0 : index
    %c0_66 = arith.constant 0 : index
    %212 = vector.load %arg12[%c0_65, %c0_66] : memref<1x64xf32, #tpu.memory_space<vmem>>, vector<1x64xf32>
    %213 = vector.broadcast %212 : vector<1x64xf32> to vector<16x64xf32>
    %214 = arith.addf %211, %213 : vector<16x64xf32>
    %cst_67 = arith.constant 0.000000e+00 : f32
    %215 = vector.broadcast %cst_67 : f32 to vector<16x64xf32>
    %216 = arith.maximumf %214, %215 : vector<16x64xf32>
    %217 = arith.truncf %216 : vector<16x64xf32> to vector<16x64xbf16>
    %c0_68 = arith.constant 0 : index
    %c0_69 = arith.constant 0 : index
    %218 = vector.load %arg13[%c0_68, %c0_69] : memref<64x32xbf16, #tpu.memory_space<vmem>>, vector<64x32xbf16>
    %cst_70 = arith.constant dense<0.000000e+00> : vector<16x32xf32>
    %219 = tpu.matmul %217, %218, %cst_70 {dimension_numbers = #tpu.dot_dimension_numbers<[1], [0], [0], [1], [0, 0, 1, 1], [], []>} : vector<16x64xbf16>, vector<64x32xbf16>, vector<16x32xf32> -> vector<16x32xf32>
    %c0_71 = arith.constant 0 : index
    %c0_72 = arith.constant 0 : index
    %220 = vector.load %arg14[%c0_71, %c0_72] : memref<1x32xf32, #tpu.memory_space<vmem>>, vector<1x32xf32>
    %221 = vector.broadcast %220 : vector<1x32xf32> to vector<16x32xf32>
    %222 = arith.addf %219, %221 : vector<16x32xf32>
    %223 = arith.addf %208, %222 : vector<16x32xf32>
    %c0_73 = arith.constant 0 : index
    %c0_74 = arith.constant 0 : index
    %224 = vector.load %arg15[%c0_73, %c0_74] : memref<1x32xf32, #tpu.memory_space<vmem>>, vector<1x32xf32>
    %c0_75 = arith.constant 0 : index
    %c0_76 = arith.constant 0 : index
    %225 = vector.load %arg16[%c0_75, %c0_76] : memref<1x32xf32, #tpu.memory_space<vmem>>, vector<1x32xf32>
    %cst_77 = arith.constant dense<0.000000e+00> : vector<16xf32>
    %226 = vector.multi_reduction <add>, %223, %cst_77 [1] : vector<16x32xf32> to vector<16xf32>
    %227 = vector.shape_cast %226 : vector<16xf32> to vector<16x1xf32>
    %cst_78 = arith.constant 3.200000e+01 : f32
    %228 = vector.broadcast %cst_78 : f32 to vector<16x1xf32>
    %229 = arith.divf %227, %228 : vector<16x1xf32>
    %230 = vector.broadcast %229 : vector<16x1xf32> to vector<16x32xf32>
    %231 = arith.subf %223, %230 : vector<16x32xf32>
    %232 = arith.mulf %231, %231 : vector<16x32xf32>
    %cst_79 = arith.constant dense<0.000000e+00> : vector<16xf32>
    %233 = vector.multi_reduction <add>, %232, %cst_79 [1] : vector<16x32xf32> to vector<16xf32>
    %234 = vector.shape_cast %233 : vector<16xf32> to vector<16x1xf32>
    %cst_80 = arith.constant 3.200000e+01 : f32
    %235 = vector.broadcast %cst_80 : f32 to vector<16x1xf32>
    %236 = arith.divf %234, %235 : vector<16x1xf32>
    %237 = vector.broadcast %229 : vector<16x1xf32> to vector<16x32xf32>
    %238 = arith.subf %223, %237 : vector<16x32xf32>
    %cst_81 = arith.constant 9.99999974E-6 : f32
    %239 = vector.broadcast %cst_81 : f32 to vector<16x1xf32>
    %240 = arith.addf %236, %239 : vector<16x1xf32>
    %241 = math.rsqrt %240 : vector<16x1xf32>
    %242 = vector.broadcast %241 : vector<16x1xf32> to vector<16x32xf32>
    %243 = arith.mulf %238, %242 : vector<16x32xf32>
    %244 = vector.broadcast %224 : vector<1x32xf32> to vector<16x32xf32>
    %245 = arith.mulf %243, %244 : vector<16x32xf32>
    %246 = vector.broadcast %225 : vector<1x32xf32> to vector<16x32xf32>
    %247 = arith.addf %245, %246 : vector<16x32xf32>
    %248 = vector.shape_cast %247 : vector<16x32xf32> to vector<2x8x32xf32>
    %c0_82 = arith.constant 0 : index
    %c0_83 = arith.constant 0 : index
    %c0_84 = arith.constant 0 : index
    %249 = vector.load %arg17[%c0_82, %c0_83, %c0_84] : memref<2x8x32xf32, #tpu.memory_space<vmem>>, vector<2x8x32xf32>
    tpu.vector_store %arg17[%c0_82, %c0_83, %c0_84], %248 {strides = array<i32>} : memref<2x8x32xf32, #tpu.memory_space<vmem>>, vector<2x8x32xf32>,
    return
  }
  func.func @transform_0(%arg0: i32) -> (i32, i32, i32) {
    %c0_i32 = arith.constant 0 : i32
    %c0_i32_0 = arith.constant 0 : i32
    %c0_i32_1 = arith.constant 0 : i32
    return %c0_i32, %arg0, %c0_i32_0 : i32, i32, i32
  }
  func.func @transform_1(%arg0: i32) -> (i32, i32) {
    %c0_i32 = arith.constant 0 : i32
    %c0_i32_0 = arith.constant 0 : i32
    return %arg0, %c0_i32 : i32, i32
  }
  func.func @transform_2(%arg0: i32) -> (i32, i32) {
    %c0_i32 = arith.constant 0 : i32
    %c0_i32_0 = arith.constant 0 : i32
    %c0_i32_1 = arith.constant 0 : i32
    return %c0_i32, %c0_i32_0 : i32, i32
  }
  func.func @transform_3(%arg0: i32) -> (i32, i32) {
    %c0_i32 = arith.constant 0 : i32
    %c0_i32_0 = arith.constant 0 : i32
    %c0_i32_1 = arith.constant 0 : i32
    return %c0_i32, %c0_i32_0 : i32, i32
  }
  func.func @transform_4(%arg0: i32) -> (i32, i32) {
    %c0_i32 = arith.constant 0 : i32
    %c0_i32_0 = arith.constant 0 : i32
    %c0_i32_1 = arith.constant 0 : i32
    return %c0_i32, %c0_i32_0 : i32, i32
  }
  func.func @transform_5(%arg0: i32) -> (i32, i32) {
    %c0_i32 = arith.constant 0 : i32
    %c0_i32_0 = arith.constant 0 : i32
    %c0_i32_1 = arith.constant 0 : i32
    return %c0_i32, %c0_i32_0 : i32, i32
  }
  func.func @transform_6(%arg0: i32) -> (i32, i32, i32) {
    %c0_i32 = arith.constant 0 : i32
    %c0_i32_0 = arith.constant 0 : i32
    %c0_i32_1 = arith.constant 0 : i32
    %c0_i32_2 = arith.constant 0 : i32
    return %c0_i32, %c0_i32_0, %c0_i32_1 : i32, i32, i32
  }
  func.func @transform_7(%arg0: i32) -> (i32, i32) {
    %c0_i32 = arith.constant 0 : i32
    %c0_i32_0 = arith.constant 0 : i32
    %c0_i32_1 = arith.constant 0 : i32
    return %c0_i32, %c0_i32_0 : i32, i32
  }
  func.func @transform_8(%arg0: i32) -> (i32, i32) {
    %c0_i32 = arith.constant 0 : i32
    %c0_i32_0 = arith.constant 0 : i32
    %c0_i32_1 = arith.constant 0 : i32
    return %c0_i32, %c0_i32_0 : i32, i32
  }
  func.func @transform_9(%arg0: i32) -> (i32, i32) {
    %c0_i32 = arith.constant 0 : i32
    %c0_i32_0 = arith.constant 0 : i32
    %c0_i32_1 = arith.constant 0 : i32
    return %c0_i32, %c0_i32_0 : i32, i32
  }
  func.func @transform_10(%arg0: i32) -> (i32, i32) {
    %c0_i32 = arith.constant 0 : i32
    %c0_i32_0 = arith.constant 0 : i32
    %c0_i32_1 = arith.constant 0 : i32
    return %c0_i32, %c0_i32_0 : i32, i32
  }
  func.func @transform_11(%arg0: i32) -> (i32, i32) {
    %c0_i32 = arith.constant 0 : i32
    %c0_i32_0 = arith.constant 0 : i32
    %c0_i32_1 = arith.constant 0 : i32
    return %c0_i32, %c0_i32_0 : i32, i32
  }
  func.func @transform_12(%arg0: i32) -> (i32, i32) {
    %c0_i32 = arith.constant 0 : i32
    %c0_i32_0 = arith.constant 0 : i32
    %c0_i32_1 = arith.constant 0 : i32
    return %c0_i32, %c0_i32_0 : i32, i32
  }
  func.func @transform_13(%arg0: i32) -> (i32, i32) {
    %c0_i32 = arith.constant 0 : i32
    %c0_i32_0 = arith.constant 0 : i32
    %c0_i32_1 = arith.constant 0 : i32
    return %c0_i32, %c0_i32_0 : i32, i32
  }
  func.func @transform_14(%arg0: i32) -> (i32, i32) {
    %c0_i32 = arith.constant 0 : i32
    %c0_i32_0 = arith.constant 0 : i32
    %c0_i32_1 = arith.constant 0 : i32
    return %c0_i32, %c0_i32_0 : i32, i32
  }
  func.func @transform_15(%arg0: i32) -> (i32, i32) {
    %c0_i32 = arith.constant 0 : i32
    %c0_i32_0 = arith.constant 0 : i32
    %c0_i32_1 = arith.constant 0 : i32
    return %c0_i32, %c0_i32_0 : i32, i32
  }
  func.func @transform_16(%arg0: i32) -> (i32, i32, i32) {
    %c0_i32 = arith.constant 0 : i32
    %c0_i32_0 = arith.constant 0 : i32
    %c0_i32_1 = arith.constant 0 : i32
    return %c0_i32, %arg0, %c0_i32_0 : i32, i32, i32
  }
}

</mosaic_0001>

<llo_original>
// kernel: transformer_encoder_forward.1
$region0: #{transformer_encoder_forward.1}
  #allocation0 [shape = 'u32[]', space=smem, size = 0x4, offset = 0x4, fixed_abs, tag = 'smem constant byte address 0x4 - core index']
  #allocation1 [shape = 'u32[144,128]{1,0:T(1,128)}', space=vmem, size = 0x12000, scoped, tag = 'internal scratch']
  %s0 = inlined_call_operand.vmem [shape: f32[2,8,32], index: 0, kind: input, shape index: {}]
  %s1 = inlined_call_operand.vmem [shape: f32[8,32], index: 1, kind: input, shape index: {}]
  %s2 = inlined_call_operand.vmem [shape: f32[1,32], index: 2, kind: input, shape index: {}]
  %s3 = inlined_call_operand.vmem [shape: f32[1,32], index: 3, kind: input, shape index: {}]
  %s4 = inlined_call_operand.vmem [shape: bf16[32,96], index: 4, kind: input, shape index: {}]
  %s5 = inlined_call_operand.vmem [shape: f32[1,96], index: 5, kind: input, shape index: {}]
  %s6 = inlined_call_operand.vmem [shape: bf16[4,8,32], index: 6, kind: input, shape index: {}]
  %s7 = inlined_call_operand.vmem [shape: f32[1,32], index: 7, kind: input, shape index: {}]
  %s8 = inlined_call_operand.vmem [shape: f32[1,32], index: 8, kind: input, shape index: {}]
  %s9 = inlined_call_operand.vmem [shape: f32[1,32], index: 9, kind: input, shape index: {}]
  %s10 = inlined_call_operand.hbm [shape: bf16[32,64], index: 10, kind: input, shape index: {}]
  %s11 = inlined_call_operand.vmem [shape: f32[1,64], index: 11, kind: input, shape index: {}]
  %s12 = inlined_call_operand.vmem [shape: bf16[64,32], index: 12, kind: input, shape index: {}]
  %s13 = inlined_call_operand.vmem [shape: f32[1,32], index: 13, kind: input, shape index: {}]
  %s14 = inlined_call_operand.hbm [shape: f32[1,32], index: 14, kind: input, shape index: {}]
  %s15 = inlined_call_operand.hbm [shape: f32[1,32], index: 15, kind: input, shape index: {}]
  %s16 = inlined_call_operand.hbm [shape: f32[2,8,32], index: 16, kind: output, shape index: {}]
  %s17 = sld [smem:[#allocation0]]
  $region86: #{transformer_encoder_forward.1} parent=0
    _
  %s19 = ssub.s32 1, %s17
  %s20 = scalar_select 0, %s19, %s17
  $region1: #{transformer_encoder_forward.1} parent=0
    #allocation2 [shape = 'u8[8192]{0}', space=vmem, size = 0x2000, scoped, tag = 'input window, operand 10, single buffered']
    #allocation3 [shape = 's32[1]{0}', space=sflag, size = 0x4, scoped, tag = 'scoped memory for transformer_encoder_forward.1']
    #allocation4 [shape = 's32[1]{0}', space=sflag, size = 0x4, scoped, tag = 'scoped memory for transformer_encoder_forward.1']
    #allocation5 [shape = 'u8[512]{0}', space=vmem, size = 0x400, scoped, tag = 'input window, operand 14, single buffered']
    #allocation6 [shape = 's32[1]{0}', space=sflag, size = 0x4, scoped, tag = 'scoped memory for transformer_encoder_forward.1']
    #allocation7 [shape = 'u8[512]{0}', space=vmem, size = 0x400, scoped, tag = 'input window, operand 15, single buffered']
    #allocation8 [shape = 'u8[8192]{0}', space=vmem, size = 0x2000, scoped, tag = 'output window, operand 0, single buffered']
    %21 = vsyncpa [#allocation3], 0
    %22 = vsyncpa [#allocation6], 0
    %23 = vsyncpa [#allocation4], 0
    // Predicated region
    $region2: #{transformer_encoder_forward.1} parent=1 // pred_check
      _
    $region3: #{transformer_encoder_forward.1} parent=1 // pred_check_branch
      %25 = sbr.rel (0) target = $region5
    $region4: #{transformer_encoder_forward.1} parent=1 // pred_region
      _
    $region5: #{transformer_encoder_forward.1} parent=1 // pred_fallthru
      _
    // Predicated region
    $region6: #{transformer_encoder_forward.1} parent=1 // pred_check
      _
    $region7: #{transformer_encoder_forward.1} parent=1 // pred_check_branch
      %27 = sbr.rel (0) target = $region9
    $region8: #{transformer_encoder_forward.1} parent=1 // pred_region
      _
    $region9: #{transformer_encoder_forward.1} parent=1 // pred_fallthru
      _
    // Predicated region
    $region10: #{transformer_encoder_forward.1} parent=1 // pred_check
      _
    $region11: #{transformer_encoder_forward.1} parent=1 // pred_check_branch
      %29 = sbr.rel (0) target = $region13
    $region12: #{transformer_encoder_forward.1} parent=1 // pred_region
      _
    $region13: #{transformer_encoder_forward.1} parent=1 // pred_fallthru
      _
    // Predicated region
    $region14: #{transformer_encoder_forward.1} parent=1 // pred_check
      _
    $region15: #{transformer_encoder_forward.1} parent=1 // pred_check_branch
      %31 = sbr.rel (0) target = $region17
    $region16: #{transformer_encoder_forward.1} parent=1 // pred_region
      _
    $region17: #{transformer_encoder_forward.1} parent=1 // pred_fallthru
      _
    // Predicated region
    $region18: #{transformer_encoder_forward.1} parent=1 // pred_check
      _
    $region19: #{transformer_encoder_forward.1} parent=1 // pred_check_branch
      %33 = sbr.rel (0) target = $region21
    $region20: #{transformer_encoder_forward.1} parent=1 // pred_region
      _
    $region21: #{transformer_encoder_forward.1} parent=1 // pred_fallthru
      _
    // Predicated region
    $region22: #{transformer_encoder_forward.1} parent=1 // pred_check
      _
    $region23: #{transformer_encoder_forward.1} parent=1 // pred_check_branch
      %35 = sbr.rel (0) target = $region25
    $region24: #{transformer_encoder_forward.1} parent=1 // pred_region
      _
    $region25: #{transformer_encoder_forward.1} parent=1 // pred_fallthru
      _
    // Predicated region
    $region26: #{transformer_encoder_forward.1} parent=1 // pred_check
      _
    $region27: #{transformer_encoder_forward.1} parent=1 // pred_check_branch
      %37 = sbr.rel (0) target = $region29
    $region28: #{transformer_encoder_forward.1} parent=1 // pred_region
      _
    $region29: #{transformer_encoder_forward.1} parent=1 // pred_fallthru
      _
    // Predicated region
    $region30: #{transformer_encoder_forward.1} parent=1 // pred_check
      _
    $region31: #{transformer_encoder_forward.1} parent=1 // pred_check_branch
      %39 = sbr.rel (0) target = $region33
    $region32: #{transformer_encoder_forward.1} parent=1 // pred_region
      _
    $region33: #{transformer_encoder_forward.1} parent=1 // pred_fallthru
      _
    // Predicated region
    $region34: #{transformer_encoder_forward.1} parent=1 // pred_check
      _
    $region35: #{transformer_encoder_forward.1} parent=1 // pred_check_branch
      %41 = sbr.rel (0) target = $region37
    $region36: #{transformer_encoder_forward.1} parent=1 // pred_region
      _
    $region37: #{transformer_encoder_forward.1} parent=1 // pred_fallthru
      _
    // Predicated region
    $region38: #{transformer_encoder_forward.1} parent=1 // pred_check
      _
    $region39: #{transformer_encoder_forward.1} parent=1 // pred_check_branch
      %43 = sbr.rel (0) target = $region41
    $region40: #{transformer_encoder_forward.1} parent=1 // pred_region
      _
    $region41: #{transformer_encoder_forward.1} parent=1 // pred_fallthru
      _
    // Predicated region
    $region42: #{transformer_encoder_forward.1} parent=1 // pred_check
      _
    $region43: #{transformer_encoder_forward.1} parent=1 // pred_check_branch
      %45 = sbr.rel (0) target = $region45
    $region44: #{transformer_encoder_forward.1} parent=1 // pred_region
      %s47 = ssub.s32 256, 256
      %48 = vsyncadd [#allocation3], %s47
      %s49 = sshll.u32 [#allocation2], 4
      %s50 = int_to_ptr.vmem [resolvable:$true] %s49
      %55 = dma.hbm_to_vmem [thread:$0]  %s10, 256, %s50, [#allocation3], 64, 64, 4
    $region45: #{transformer_encoder_forward.1} parent=1 // pred_fallthru
      _
    // Predicated region
    $region46: #{transformer_encoder_forward.1} parent=1 // pred_check
      _
    $region47: #{transformer_encoder_forward.1} parent=1 // pred_check_branch
      %57 = sbr.rel (0) target = $region49
    $region48: #{transformer_encoder_forward.1} parent=1 // pred_region
      _
    $region49: #{transformer_encoder_forward.1} parent=1 // pred_fallthru
      _
    // Predicated region
    $region50: #{transformer_encoder_forward.1} parent=1 // pred_check
      _
    $region51: #{transformer_encoder_forward.1} parent=1 // pred_check_branch
      %59 = sbr.rel (0) target = $region53
    $region52: #{transformer_encoder_forward.1} parent=1 // pred_region
      _
    $region53: #{transformer_encoder_forward.1} parent=1 // pred_fallthru
      _
    // Predicated region
    $region54: #{transformer_encoder_forward.1} parent=1 // pred_check
      _
    $region55: #{transformer_encoder_forward.1} parent=1 // pred_check_branch
      %61 = sbr.rel (0) target = $region57
    $region56: #{transformer_encoder_forward.1} parent=1 // pred_region
      _
    $region57: #{transformer_encoder_forward.1} parent=1 // pred_fallthru
      _
    // Predicated region
    $region58: #{transformer_encoder_forward.1} parent=1 // pred_check
      _
    $region59: #{transformer_encoder_forward.1} parent=1 // pred_check_branch
      %63 = sbr.rel (0) target = $region61
    $region60: #{transformer_encoder_forward.1} parent=1 // pred_region
      %s65 = ssub.s32 16, 16
      %66 = vsyncadd [#allocation6], %s65
      %s68 = sshll.u32 [#allocation5], 4
      %s69 = int_to_ptr.vmem [resolvable:$true] %s68
      %71 = dma.hbm_to_vmem [thread:$0]  %s14, 16, %s69, [#allocation6]
    $region61: #{transformer_encoder_forward.1} parent=1 // pred_fallthru
      _
    // Predicated region
    $region62: #{transformer_encoder_forward.1} parent=1 // pred_check
      _
    $region63: #{transformer_encoder_forward.1} parent=1 // pred_check_branch
      %73 = sbr.rel (0) target = $region65
    $region64: #{transformer_encoder_forward.1} parent=1 // pred_region
      %s75 = ssub.s32 16, 16
      %76 = vsyncadd [#allocation6], %s75
      %s78 = sshll.u32 [#allocation7], 4
      %s79 = int_to_ptr.vmem [resolvable:$true] %s78
      %81 = dma.hbm_to_vmem [thread:$0]  %s15, 16, %s79, [#allocation6]
    $region65: #{transformer_encoder_forward.1} parent=1 // pred_fallthru
      _
    // Predicated region
    $region66: #{transformer_encoder_forward.1} parent=1 // pred_check
      _
    $region67: #{transformer_encoder_forward.1} parent=1 // pred_check_branch
      %83 = sbr.rel (0) target = $region69
    $region68: #{transformer_encoder_forward.1} parent=1 // pred_region
      %84 = dma.done [#allocation3], 256
    $region69: #{transformer_encoder_forward.1} parent=1 // pred_fallthru
      _
    // Predicated region
    $region70: #{transformer_encoder_forward.1} parent=1 // pred_check
      _
    $region71: #{transformer_encoder_forward.1} parent=1 // pred_check_branch
      %86 = sbr.rel (0) target = $region73
    $region72: #{transformer_encoder_forward.1} parent=1 // pred_region
      %87 = dma.done [#allocation6], 16
    $region73: #{transformer_encoder_forward.1} parent=1 // pred_fallthru
      _
    // Predicated region
    $region74: #{transformer_encoder_forward.1} parent=1 // pred_check
      _
    $region75: #{transformer_encoder_forward.1} parent=1 // pred_check_branch
      %89 = sbr.rel (0) target = $region77
    $region76: #{transformer_encoder_forward.1} parent=1 // pred_region
      %90 = dma.done [#allocation6], 16
    $region77: #{transformer_encoder_forward.1} parent=1 // pred_fallthru
      _
    %v92 = vld [vmem:[%s0] sm:$0xff]
    %v93 = vld [vmem:[%s0 + $0x8] sm:$0xff]
    %v94 = vld [vmem:[%s1] sm:$0xff]
    %v95 = vadd.f32 %v92, %v94
    %v96 = vadd.f32 %v93, %v94
    %v97 = vld [vmem:[%s2] sm:$0x1]
    %v98 = vld [vmem:[%s3] sm:$0x1]
    %vm99 = vcmask 261120
    %v100 = vsel %vm99, %v95, 0.0
    %101 = vadd.xlane.f32.xlu0 %v100
    %v102 = vpop.xlane.xlu0 %101
    %v103 = vsel %vm99, %v96, 0.0
    %104 = vadd.xlane.f32.xlu0 %v103
    %v105 = vpop.xlane.xlu0 %104
    %v106 = vrcp.pop 32.0
    %v107 = vmul.f32 %v102, %v106
    %v108 = vmul.f32 %v105, %v106
    %v109 = vsub.f32 %v95, %v107
    %v110 = vsub.f32 %v96, %v108
    %v111 = vmul.f32 %v109, %v109
    %v112 = vmul.f32 %v110, %v110
    %v113 = vsel %vm99, %v111, 0.0
    %114 = vadd.xlane.f32.xlu0 %v113
    %v115 = vpop.xlane.xlu0 %114
    %v116 = vsel %vm99, %v112, 0.0
    %117 = vadd.xlane.f32.xlu0 %v116
    %v118 = vpop.xlane.xlu0 %117
    %v119 = vmul.f32 %v115, %v106
    %v120 = vmul.f32 %v118, %v106
    %v121 = vadd.f32 %v119, 1e-05
    %v122 = vadd.f32 %v120, 1e-05
    %v123 = vrsqrt.pop %v121
    %v124 = vrsqrt.pop %v122
    %v125 = vmul.f32 %v109, %v123
    %v126 = vmul.f32 %v110, %v124
    %v128 = vlaneseq
    %v129 = vshrl.u32 %v128, 7
    %v130 = vsub.s32 0, %v129
    %v131 = vrot.slane %v97, %v130
    %v133 = vmul.f32 %v125, %v131
    %v134 = vmul.f32 %v126, %v131
    %v136 = vlaneseq
    %v137 = vshrl.u32 %v136, 7
    %v138 = vsub.s32 0, %v137
    %v139 = vrot.slane %v98, %v138
    %v141 = vadd.f32 %v133, %v139
    %v142 = vadd.f32 %v134, %v139
    %v143 = vpack.c.bf16 %v142, %v141
    %v144 = vld [vmem:[%s4] sm:$0xf]
    %v145 = vld [vmem:[%s4 + $0x4] sm:$0xf]
    %v146 = vld [vmem:[%s4 + $0x8] sm:$0xf]
    %v147 = vld [vmem:[%s4 + $0xc] sm:$0xf]
    %v148 = vld [vmem:[%s5] sm:$0x1]
    %v150 = vlaneseq
    %v151 = vshrl.u32 %v150, 7
    %v152 = vsub.s32 0, %v151
    %v153 = vrot.slane %v148, %v152
    %v159 = vunpack.c.l.b16 %v144
    %v160 = vunpack.c.l.b16 %v145
    %v161 = vunpack.c.l.b16 %v146
    %v162 = vunpack.c.l.b16 %v147
    %v163 = vpack.c.b16 %v160, %v159
    %v164 = vpack.c.b16 %v162, %v161
    %v168 = vsel %vm99, %v143, 0
    %170 = vmatprep.subr.bf16.mxu0 0
    %171 = vmatpush1.bf16.msra.mxu0 0
    %172 = vmatprep.subr.bf16.mxu0 0
    %173 = vmatpush1.bf16.msra.mxu0 0
    %174 = vmatprep.subr.bf16.mxu0 0
    %175 = vmatpush1.bf16.msra.mxu0 0
    %176 = vmatprep.subr.bf16.mxu0 0
    %177 = vmatpush1.bf16.msra.mxu0 0
    %178 = vmatprep.subr.bf16.mxu0 0
    %179 = vmatpush1.bf16.msra.mxu0 0
    %180 = vmatprep.subr.bf16.mxu0 0
    %181 = vmatpush1.bf16.msra.mxu0 0
    %182 = vmatprep.subr.bf16.mxu0 0
    %183 = vmatpush1.bf16.msra.mxu0 %v164
    %184 = vmatprep.subr.bf16.mxu0 0
    %185 = vmatpush1.bf16.msra.mxu0 %v163
    %186 = vmatprep.subr.bf16.mxu0 0
    %187 = vmatpush2.bf16.msra.mxu0 0
    %188 = vmatprep.subr.bf16.mxu0 0
    %189 = vmatpush2.bf16.msra.mxu0 0
    %190 = vmatprep.subr.bf16.mxu0 0
    %191 = vmatpush2.bf16.msra.mxu0 0
    %192 = vmatprep.subr.bf16.mxu0 0
    %193 = vmatpush2.bf16.msra.mxu0 0
    %194 = vmatprep.subr.bf16.mxu0 0
    %195 = vmatpush2.bf16.msra.mxu0 0
    %196 = vmatprep.subr.bf16.mxu0 0
    %197 = vmatpush2.bf16.msra.mxu0 0
    %198 = vmatprep.subr.bf16.mxu0 0
    %199 = vmatpush2.bf16.msra.mxu0 0
    %200 = vmatprep.subr.bf16.mxu0 0
    %201 = vmatpush2.bf16.msra.mxu0 0
    %202 = vmatprep.mubr.bf16.mxu0 0
    %203 = vmatmul.mubr.bf16.gmra.mxu0 %v168
    %v204 = vpop.f32.mrf.mxu0
    %v205 = vadd.f32 %v153, %v204
    %v206 = vpop.f32.mrf.mxu0
    %v207 = vpop.f32.mrf.mxu0
    %v208 = vadd.f32 %v153, %v207
    %v209 = vpop.f32.mrf.mxu0
    %210 = vdwg.mxu0
    %213 = vrot.lane.b32.xlu0 %v205, 96
    %v214 = vpop.permute.xlu0 %213
    %215 = vrot.lane.b32.xlu0 %v208, 96
    %v216 = vpop.permute.xlu0 %215
    %v219 = vmul.f32 %v205, %v214
    %v220 = vmul.f32 %v205, %v216
    %v221 = vmul.f32 %v208, %v214
    %v222 = vmul.f32 %v208, %v216
    %vm223 = vcmask 64512
    %v224 = vsel %vm223, %v219, 0.0
    %225 = vadd.xlane.f32.xlu0 %v224
    %v226 = vpop.xlane.xlu0 %225
    %v227 = vsel %vm223, %v220, 0.0
    %228 = vadd.xlane.f32.xlu0 %v227
    %v229 = vpop.xlane.xlu0 %228
    %v230 = vsel %vm223, %v221, 0.0
    %231 = vadd.xlane.f32.xlu0 %v230
    %v232 = vpop.xlane.xlu0 %231
    %v233 = vsel %vm223, %v222, 0.0
    %234 = vadd.xlane.f32.xlu0 %v233
    %v235 = vpop.xlane.xlu0 %234
    %v236 = vmul.f32 %v226, 0.35355338
    %v237 = vmul.f32 %v229, 0.35355338
    %v238 = vmul.f32 %v232, 0.35355338
    %v239 = vmul.f32 %v235, 0.35355338
    %v240 = vmax.f32 %v236, %v237
    %v241 = vmax.f32 %v238, %v239
    %v242 = vsub.f32 %v236, %v240
    %v243 = vsub.f32 %v237, %v240
    %v244 = vsub.f32 %v238, %v241
    %v245 = vsub.f32 %v239, %v241
    %v246 = vmul.f32 %v242, 1.442695
    %v247 = vpow.pop %v246
    %v248 = vmul.f32 %v243, 1.442695
    %v249 = vpow.pop %v248
    %v250 = vmul.f32 %v244, 1.442695
    %v251 = vpow.pop %v250
    %v252 = vmul.f32 %v245, 1.442695
    %v253 = vpow.pop %v252
    %v254 = vadd.f32 %v247, %v249
    %v255 = vadd.f32 %v251, %v253
    %v256 = vrcp.pop %v254
    %v257 = vrcp.pop %v255
    %v258 = vmul.f32 %v247, %v256
    %v259 = vmul.f32 %v249, %v256
    %v260 = vmul.f32 %v251, %v257
    %v261 = vmul.f32 %v253, %v257
    %v262 = vmul.f32 %v258, %v205
    %v263 = vmul.f32 %v259, %v208
    %v264 = vmul.f32 %v260, %v205
    %v265 = vmul.f32 %v261, %v208
    %vm266 = vcmask 589312
    %v267 = vsel %vm266, %v262, 0.0
    %v268 = vsel %vm266, %v263, 0.0
    %v269 = vadd.f32 %v267, %v268
    %v270 = vsel %vm266, %v264, 0.0
    %v271 = vsel %vm266, %v265, 0.0
    %v272 = vadd.f32 %v270, %v271
    %v273 = vpack.c.bf16 %v272, %v269
    %v274 = vld [vmem:[%s6] sm:$0xf]
    %279 = vrot.lane.b32.xlu0 %v219, 120
    %v280 = vpop.permute.xlu0 %279
    %281 = vrot.lane.b32.xlu0 %v220, 120
    %v282 = vpop.permute.xlu0 %281
    %283 = vrot.lane.b32.xlu0 %v221, 120
    %v284 = vpop.permute.xlu0 %283
    %285 = vrot.lane.b32.xlu0 %v222, 120
    %v286 = vpop.permute.xlu0 %285
    %v291 = vsel %vm223, %v280, 0.0
    %292 = vadd.xlane.f32.xlu0 %v291
    %v293 = vpop.xlane.xlu0 %292
    %v294 = vsel %vm223, %v282, 0.0
    %295 = vadd.xlane.f32.xlu0 %v294
    %v296 = vpop.xlane.xlu0 %295
    %v297 = vsel %vm223, %v284, 0.0
    %298 = vadd.xlane.f32.xlu0 %v297
    %v299 = vpop.xlane.xlu0 %298
    %v300 = vsel %vm223, %v286, 0.0
    %301 = vadd.xlane.f32.xlu0 %v300
    %v302 = vpop.xlane.xlu0 %301
    %v303 = vmul.f32 %v293, 0.35355338
    %v304 = vmul.f32 %v296, 0.35355338
    %v305 = vmul.f32 %v299, 0.35355338
    %v306 = vmul.f32 %v302, 0.35355338
    %v307 = vmax.f32 %v303, %v304
    %v308 = vmax.f32 %v305, %v306
    %v309 = vsub.f32 %v303, %v307
    %v310 = vsub.f32 %v304, %v307
    %v311 = vsub.f32 %v305, %v308
    %v312 = vsub.f32 %v306, %v308
    %v313 = vmul.f32 %v309, 1.442695
    %v314 = vpow.pop %v313
    %v315 = vmul.f32 %v310, 1.442695
    %v316 = vpow.pop %v315
    %v317 = vmul.f32 %v311, 1.442695
    %v318 = vpow.pop %v317
    %v319 = vmul.f32 %v312, 1.442695
    %v320 = vpow.pop %v319
    %v321 = vadd.f32 %v314, %v316
    %v322 = vadd.f32 %v318, %v320
    %v323 = vrcp.pop %v321
    %v324 = vrcp.pop %v322
    %v325 = vmul.f32 %v314, %v323
    %v326 = vmul.f32 %v316, %v323
    %v327 = vmul.f32 %v318, %v324
    %v328 = vmul.f32 %v320, %v324
    %v329 = vmul.f32 %v325, %v205
    %v330 = vmul.f32 %v326, %v208
    %v331 = vmul.f32 %v327, %v205
    %v332 = vmul.f32 %v328, %v208
    %vm333 = vcmask 654912
    %v334 = vsel %vm333, %v329, 0.0
    %v335 = vsel %vm333, %v330, 0.0
    %v336 = vadd.f32 %v334, %v335
    %v337 = vsel %vm333, %v331, 0.0
    %v338 = vsel %vm333, %v332, 0.0
    %v339 = vadd.f32 %v337, %v338
    %v340 = vpack.c.bf16 %v339, %v336
    %s341 = scalar_lea.vmem %s6, 4
    %v342 = vld [vmem:[%s341] sm:$0xf]
    %344 = vrot.lane.b32.xlu0 %v340, 56
    %v345 = vpop.permute.xlu0 %344
    %v347 = vsel %vm223, %v345, 0
    %vm349 = vcmask 1043456
    %v351 = vsel %vm349, %v342, 0
    %353 = vmatprep.subr.bf16.mxu0 0
    %354 = vmatpush1.bf16.msra.mxu0 0
    %355 = vmatprep.subr.bf16.mxu0 0
    %356 = vmatpush1.bf16.msra.mxu0 0
    %357 = vmatprep.subr.bf16.mxu0 0
    %358 = vmatpush1.bf16.msra.mxu0 0
    %359 = vmatprep.subr.bf16.mxu0 0
    %360 = vmatpush1.bf16.msra.mxu0 0
    %361 = vmatprep.subr.bf16.mxu0 0
    %362 = vmatpush1.bf16.msra.mxu0 0
    %363 = vmatprep.subr.bf16.mxu0 0
    %364 = vmatpush1.bf16.msra.mxu0 0
    %365 = vmatprep.subr.bf16.mxu0 0
    %366 = vmatpush1.bf16.msra.mxu0 0
    %367 = vmatprep.subr.bf16.mxu0 0
    %368 = vmatpush1.bf16.msra.mxu0 %v351
    %369 = vmatprep.subr.bf16.mxu0 0
    %370 = vmatpush2.bf16.msra.mxu0 0
    %371 = vmatprep.subr.bf16.mxu0 0
    %372 = vmatpush2.bf16.msra.mxu0 0
    %373 = vmatprep.subr.bf16.mxu0 0
    %374 = vmatpush2.bf16.msra.mxu0 0
    %375 = vmatprep.subr.bf16.mxu0 0
    %376 = vmatpush2.bf16.msra.mxu0 0
    %377 = vmatprep.subr.bf16.mxu0 0
    %378 = vmatpush2.bf16.msra.mxu0 0
    %379 = vmatprep.subr.bf16.mxu0 0
    %380 = vmatpush2.bf16.msra.mxu0 0
    %381 = vmatprep.subr.bf16.mxu0 0
    %382 = vmatpush2.bf16.msra.mxu0 0
    %383 = vmatprep.subr.bf16.mxu0 0
    %384 = vmatpush2.bf16.msra.mxu0 0
    %385 = vmatprep.mubr.bf16.mxu0 0
    %386 = vmatmul.mubr.bf16.gmra.mxu0 %v347
    %v387 = vpop.f32.mrf.mxu0
    %v388 = vadd.f32 0.0, %v387
    %v389 = vpop.f32.mrf.mxu0
    %v390 = vpop.f32.mrf.mxu0
    %v391 = vadd.f32 0.0, %v390
    %v392 = vpop.f32.mrf.mxu0
    %393 = vdwg.mxu0
    %395 = vrot.lane.b32.xlu0 %v273, 64
    %v396 = vpop.permute.xlu0 %395
    %v398 = vsel %vm223, %v396, 0
    %v401 = vsel %vm349, %v274, 0
    %403 = vmatprep.subr.bf16.mxu0 0
    %404 = vmatpush1.bf16.msra.mxu0 0
    %405 = vmatprep.subr.bf16.mxu0 0
    %406 = vmatpush1.bf16.msra.mxu0 0
    %407 = vmatprep.subr.bf16.mxu0 0
    %408 = vmatpush1.bf16.msra.mxu0 0
    %409 = vmatprep.subr.bf16.mxu0 0
    %410 = vmatpush1.bf16.msra.mxu0 0
    %411 = vmatprep.subr.bf16.mxu0 0
    %412 = vmatpush1.bf16.msra.mxu0 0
    %413 = vmatprep.subr.bf16.mxu0 0
    %414 = vmatpush1.bf16.msra.mxu0 0
    %415 = vmatprep.subr.bf16.mxu0 0
    %416 = vmatpush1.bf16.msra.mxu0 0
    %417 = vmatprep.subr.bf16.mxu0 0
    %418 = vmatpush1.bf16.msra.mxu0 %v401
    %419 = vmatprep.subr.bf16.mxu0 0
    %420 = vmatpush2.bf16.msra.mxu0 0
    %421 = vmatprep.subr.bf16.mxu0 0
    %422 = vmatpush2.bf16.msra.mxu0 0
    %423 = vmatprep.subr.bf16.mxu0 0
    %424 = vmatpush2.bf16.msra.mxu0 0
    %425 = vmatprep.subr.bf16.mxu0 0
    %426 = vmatpush2.bf16.msra.mxu0 0
    %427 = vmatprep.subr.bf16.mxu0 0
    %428 = vmatpush2.bf16.msra.mxu0 0
    %429 = vmatprep.subr.bf16.mxu0 0
    %430 = vmatpush2.bf16.msra.mxu0 0
    %431 = vmatprep.subr.bf16.mxu0 0
    %432 = vmatpush2.bf16.msra.mxu0 0
    %433 = vmatprep.subr.bf16.mxu0 0
    %434 = vmatpush2.bf16.msra.mxu0 0
    %435 = vmatprep.mubr.bf16.mxu0 0
    %436 = vmatmul.mubr.bf16.gmra.mxu0 %v398
    %v437 = vpop.f32.mrf.mxu0
    %v438 = vadd.f32 %v388, %v437
    %v439 = vpop.f32.mrf.mxu0
    %v440 = vpop.f32.mrf.mxu0
    %v441 = vadd.f32 %v391, %v440
    %v442 = vpop.f32.mrf.mxu0
    %443 = vdwg.mxu0
    %444 = vrot.lane.b32.xlu0 %v219, 112
    %v445 = vpop.permute.xlu0 %444
    %446 = vrot.lane.b32.xlu0 %v220, 112
    %v447 = vpop.permute.xlu0 %446
    %448 = vrot.lane.b32.xlu0 %v221, 112
    %v449 = vpop.permute.xlu0 %448
    %450 = vrot.lane.b32.xlu0 %v222, 112
    %v451 = vpop.permute.xlu0 %450
    %v456 = vsel %vm223, %v445, 0.0
    %457 = vadd.xlane.f32.xlu0 %v456
    %v458 = vpop.xlane.xlu0 %457
    %v459 = vsel %vm223, %v447, 0.0
    %460 = vadd.xlane.f32.xlu0 %v459
    %v461 = vpop.xlane.xlu0 %460
    %v462 = vsel %vm223, %v449, 0.0
    %463 = vadd.xlane.f32.xlu0 %v462
    %v464 = vpop.xlane.xlu0 %463
    %v465 = vsel %vm223, %v451, 0.0
    %466 = vadd.xlane.f32.xlu0 %v465
    %v467 = vpop.xlane.xlu0 %466
    %v468 = vmul.f32 %v458, 0.35355338
    %v469 = vmul.f32 %v461, 0.35355338
    %v470 = vmul.f32 %v464, 0.35355338
    %v471 = vmul.f32 %v467, 0.35355338
    %v472 = vmax.f32 %v468, %v469
    %v473 = vmax.f32 %v470, %v471
    %v474 = vsub.f32 %v468, %v472
    %v475 = vsub.f32 %v469, %v472
    %v476 = vsub.f32 %v470, %v473
    %v477 = vsub.f32 %v471, %v473
    %v478 = vmul.f32 %v474, 1.442695
    %v479 = vpow.pop %v478
    %v480 = vmul.f32 %v475, 1.442695
    %v481 = vpow.pop %v480
    %v482 = vmul.f32 %v476, 1.442695
    %v483 = vpow.pop %v482
    %v484 = vmul.f32 %v477, 1.442695
    %v485 = vpow.pop %v484
    %v486 = vadd.f32 %v479, %v481
    %v487 = vadd.f32 %v483, %v485
    %v488 = vrcp.pop %v486
    %v489 = vrcp.pop %v487
    %v490 = vmul.f32 %v479, %v488
    %v491 = vmul.f32 %v481, %v488
    %v492 = vmul.f32 %v483, %v489
    %v493 = vmul.f32 %v485, %v489
    %v494 = vmul.f32 %v490, %v205
    %v495 = vmul.f32 %v491, %v208
    %v496 = vmul.f32 %v492, %v205
    %v497 = vmul.f32 %v493, %v208
    %vm498 = vcmask 720512
    %v499 = vsel %vm498, %v494, 0.0
    %v500 = vsel %vm498, %v495, 0.0
    %v501 = vadd.f32 %v499, %v500
    %v502 = vsel %vm498, %v496, 0.0
    %v503 = vsel %vm498, %v497, 0.0
    %v504 = vadd.f32 %v502, %v503
    %v505 = vpack.c.bf16 %v504, %v501
    %s506 = scalar_lea.vmem %s6, 8
    %v507 = vld [vmem:[%s506] sm:$0xf]
    %509 = vrot.lane.b32.xlu0 %v505, 48
    %v510 = vpop.permute.xlu0 %509
    %v512 = vsel %vm223, %v510, 0
    %v515 = vsel %vm349, %v507, 0
    %517 = vmatprep.subr.bf16.mxu0 0
    %518 = vmatpush1.bf16.msra.mxu0 0
    %519 = vmatprep.subr.bf16.mxu0 0
    %520 = vmatpush1.bf16.msra.mxu0 0
    %521 = vmatprep.subr.bf16.mxu0 0
    %522 = vmatpush1.bf16.msra.mxu0 0
    %523 = vmatprep.subr.bf16.mxu0 0
    %524 = vmatpush1.bf16.msra.mxu0 0
    %525 = vmatprep.subr.bf16.mxu0 0
    %526 = vmatpush1.bf16.msra.mxu0 0
    %527 = vmatprep.subr.bf16.mxu0 0
    %528 = vmatpush1.bf16.msra.mxu0 0
    %529 = vmatprep.subr.bf16.mxu0 0
    %530 = vmatpush1.bf16.msra.mxu0 0
    %531 = vmatprep.subr.bf16.mxu0 0
    %532 = vmatpush1.bf16.msra.mxu0 %v515
    %533 = vmatprep.subr.bf16.mxu0 0
    %534 = vmatpush2.bf16.msra.mxu0 0
    %535 = vmatprep.subr.bf16.mxu0 0
    %536 = vmatpush2.bf16.msra.mxu0 0
    %537 = vmatprep.subr.bf16.mxu0 0
    %538 = vmatpush2.bf16.msra.mxu0 0
    %539 = vmatprep.subr.bf16.mxu0 0
    %540 = vmatpush2.bf16.msra.mxu0 0
    %541 = vmatprep.subr.bf16.mxu0 0
    %542 = vmatpush2.bf16.msra.mxu0 0
    %543 = vmatprep.subr.bf16.mxu0 0
    %544 = vmatpush2.bf16.msra.mxu0 0
    %545 = vmatprep.subr.bf16.mxu0 0
    %546 = vmatpush2.bf16.msra.mxu0 0
    %547 = vmatprep.subr.bf16.mxu0 0
    %548 = vmatpush2.bf16.msra.mxu0 0
    %549 = vmatprep.mubr.bf16.mxu0 0
    %550 = vmatmul.mubr.bf16.gmra.mxu0 %v512
    %v551 = vpop.f32.mrf.mxu0
    %v552 = vadd.f32 0.0, %v551
    %v553 = vpop.f32.mrf.mxu0
    %v554 = vpop.f32.mrf.mxu0
    %v555 = vadd.f32 0.0, %v554
    %v556 = vpop.f32.mrf.mxu0
    %557 = vdwg.mxu0
    %v558 = vadd.f32 %v438, %v552
    %v559 = vadd.f32 %v441, %v555
    %560 = vrot.lane.b32.xlu0 %v219, 104
    %v561 = vpop.permute.xlu0 %560
    %562 = vrot.lane.b32.xlu0 %v220, 104
    %v563 = vpop.permute.xlu0 %562
    %564 = vrot.lane.b32.xlu0 %v221, 104
    %v565 = vpop.permute.xlu0 %564
    %566 = vrot.lane.b32.xlu0 %v222, 104
    %v567 = vpop.permute.xlu0 %566
    %v572 = vsel %vm223, %v561, 0.0
    %573 = vadd.xlane.f32.xlu0 %v572
    %v574 = vpop.xlane.xlu0 %573
    %v575 = vsel %vm223, %v563, 0.0
    %576 = vadd.xlane.f32.xlu0 %v575
    %v577 = vpop.xlane.xlu0 %576
    %v578 = vsel %vm223, %v565, 0.0
    %579 = vadd.xlane.f32.xlu0 %v578
    %v580 = vpop.xlane.xlu0 %579
    %v581 = vsel %vm223, %v567, 0.0
    %582 = vadd.xlane.f32.xlu0 %v581
    %v583 = vpop.xlane.xlu0 %582
    %v584 = vmul.f32 %v574, 0.35355338
    %v585 = vmul.f32 %v577, 0.35355338
    %v586 = vmul.f32 %v580, 0.35355338
    %v587 = vmul.f32 %v583, 0.35355338
    %v588 = vmax.f32 %v584, %v585
    %v589 = vmax.f32 %v586, %v587
    %v590 = vsub.f32 %v584, %v588
    %v591 = vsub.f32 %v585, %v588
    %v592 = vsub.f32 %v586, %v589
    %v593 = vsub.f32 %v587, %v589
    %v594 = vmul.f32 %v590, 1.442695
    %v595 = vpow.pop %v594
    %v596 = vmul.f32 %v591, 1.442695
    %v597 = vpow.pop %v596
    %v598 = vmul.f32 %v592, 1.442695
    %v599 = vpow.pop %v598
    %v600 = vmul.f32 %v593, 1.442695
    %v601 = vpow.pop %v600
    %v602 = vadd.f32 %v595, %v597
    %v603 = vadd.f32 %v599, %v601
    %v604 = vrcp.pop %v602
    %v605 = vrcp.pop %v603
    %v606 = vmul.f32 %v595, %v604
    %v607 = vmul.f32 %v597, %v604
    %v608 = vmul.f32 %v599, %v605
    %v609 = vmul.f32 %v601, %v605
    %v610 = vmul.f32 %v606, %v205
    %v611 = vmul.f32 %v607, %v208
    %v612 = vmul.f32 %v608, %v205
    %v613 = vmul.f32 %v609, %v208
    %vm614 = vcmask 786112
    %v615 = vsel %vm614, %v610, 0.0
    %v616 = vsel %vm614, %v611, 0.0
    %v617 = vadd.f32 %v615, %v616
    %v618 = vsel %vm614, %v612, 0.0
    %v619 = vsel %vm614, %v613, 0.0
    %v620 = vadd.f32 %v618, %v619
    %v621 = vpack.c.bf16 %v620, %v617
    %s622 = scalar_lea.vmem %s6, 12
    %v623 = vld [vmem:[%s622] sm:$0xf]
    %625 = vrot.lane.b32.xlu0 %v621, 40
    %v626 = vpop.permute.xlu0 %625
    %v628 = vsel %vm223, %v626, 0
    %v631 = vsel %vm349, %v623, 0
    %633 = vmatprep.subr.bf16.mxu0 0
    %634 = vmatpush1.bf16.msra.mxu0 0
    %635 = vmatprep.subr.bf16.mxu0 0
    %636 = vmatpush1.bf16.msra.mxu0 0
    %637 = vmatprep.subr.bf16.mxu0 0
    %638 = vmatpush1.bf16.msra.mxu0 0
    %639 = vmatprep.subr.bf16.mxu0 0
    %640 = vmatpush1.bf16.msra.mxu0 0
    %641 = vmatprep.subr.bf16.mxu0 0
    %642 = vmatpush1.bf16.msra.mxu0 0
    %643 = vmatprep.subr.bf16.mxu0 0
    %644 = vmatpush1.bf16.msra.mxu0 0
    %645 = vmatprep.subr.bf16.mxu0 0
    %646 = vmatpush1.bf16.msra.mxu0 0
    %647 = vmatprep.subr.bf16.mxu0 0
    %648 = vmatpush1.bf16.msra.mxu0 %v631
    %649 = vmatprep.subr.bf16.mxu0 0
    %650 = vmatpush2.bf16.msra.mxu0 0
    %651 = vmatprep.subr.bf16.mxu0 0
    %652 = vmatpush2.bf16.msra.mxu0 0
    %653 = vmatprep.subr.bf16.mxu0 0
    %654 = vmatpush2.bf16.msra.mxu0 0
    %655 = vmatprep.subr.bf16.mxu0 0
    %656 = vmatpush2.bf16.msra.mxu0 0
    %657 = vmatprep.subr.bf16.mxu0 0
    %658 = vmatpush2.bf16.msra.mxu0 0
    %659 = vmatprep.subr.bf16.mxu0 0
    %660 = vmatpush2.bf16.msra.mxu0 0
    %661 = vmatprep.subr.bf16.mxu0 0
    %662 = vmatpush2.bf16.msra.mxu0 0
    %663 = vmatprep.subr.bf16.mxu0 0
    %664 = vmatpush2.bf16.msra.mxu0 0
    %665 = vmatprep.mubr.bf16.mxu0 0
    %666 = vmatmul.mubr.bf16.gmra.mxu0 %v628
    %v667 = vpop.f32.mrf.mxu0
    %v668 = vadd.f32 0.0, %v667
    %v669 = vpop.f32.mrf.mxu0
    %v670 = vpop.f32.mrf.mxu0
    %v671 = vadd.f32 0.0, %v670
    %v672 = vpop.f32.mrf.mxu0
    %673 = vdwg.mxu0
    %v674 = vadd.f32 %v558, %v668
    %v675 = vadd.f32 %v559, %v671
    %v676 = vld [vmem:[%s7] sm:$0x1]
    %v678 = vlaneseq
    %v679 = vshrl.u32 %v678, 7
    %v680 = vsub.s32 0, %v679
    %v681 = vrot.slane %v676, %v680
    %v683 = vadd.f32 %v674, %v681
    %v684 = vadd.f32 %v675, %v681
    %v685 = vadd.f32 %v141, %v683
    %v686 = vadd.f32 %v142, %v684
    %v687 = vld [vmem:[%s8] sm:$0x1]
    %v688 = vld [vmem:[%s9] sm:$0x1]
    %v689 = vsel %vm99, %v685, 0.0
    %690 = vadd.xlane.f32.xlu0 %v689
    %v691 = vpop.xlane.xlu0 %690
    %v692 = vsel %vm99, %v686, 0.0
    %693 = vadd.xlane.f32.xlu0 %v692
    %v694 = vpop.xlane.xlu0 %693
    %v695 = vmul.f32 %v691, %v106
    %v696 = vmul.f32 %v694, %v106
    %v697 = vsub.f32 %v685, %v695
    %v698 = vsub.f32 %v686, %v696
    %v699 = vmul.f32 %v697, %v697
    %v700 = vmul.f32 %v698, %v698
    %v701 = vsel %vm99, %v699, 0.0
    %702 = vadd.xlane.f32.xlu0 %v701
    %v703 = vpop.xlane.xlu0 %702
    %v704 = vsel %vm99, %v700, 0.0
    %705 = vadd.xlane.f32.xlu0 %v704
    %v706 = vpop.xlane.xlu0 %705
    %v707 = vmul.f32 %v703, %v106
    %v708 = vmul.f32 %v706, %v106
    %v709 = vadd.f32 %v707, 1e-05
    %v710 = vadd.f32 %v708, 1e-05
    %v711 = vrsqrt.pop %v709
    %v712 = vrsqrt.pop %v710
    %v713 = vmul.f32 %v697, %v711
    %v714 = vmul.f32 %v698, %v712
    %v716 = vlaneseq
    %v717 = vshrl.u32 %v716, 7
    %v718 = vsub.s32 0, %v717
    %v719 = vrot.slane %v687, %v718
    %v721 = vmul.f32 %v713, %v719
    %v722 = vmul.f32 %v714, %v719
    %v724 = vlaneseq
    %v725 = vshrl.u32 %v724, 7
    %v726 = vsub.s32 0, %v725
    %v727 = vrot.slane %v688, %v726
    %v729 = vadd.f32 %v721, %v727
    %v730 = vadd.f32 %v722, %v727
    %v731 = vpack.c.bf16 %v730, %v729
    %v732 = vld [vmem:[#allocation2] sm:$0xf]
    %v733 = vld [vmem:[#allocation2 + $0x4] sm:$0xf]
    %v734 = vld [vmem:[#allocation2 + $0x8] sm:$0xf]
    %v735 = vld [vmem:[#allocation2 + $0xc] sm:$0xf]
    %v736 = vld [vmem:[%s11] sm:$0x1]
    %v738 = vlaneseq
    %v739 = vshrl.u32 %v738, 7
    %v740 = vsub.s32 0, %v739
    %v741 = vrot.slane %v736, %v740
    %v747 = vunpack.c.l.b16 %v732
    %v748 = vunpack.c.l.b16 %v733
    %v749 = vunpack.c.l.b16 %v734
    %v750 = vunpack.c.l.b16 %v735
    %v751 = vpack.c.b16 %v748, %v747
    %v752 = vpack.c.b16 %v750, %v749
    %v756 = vsel %vm99, %v731, 0
    %758 = vmatprep.subr.bf16.mxu0 0
    %759 = vmatpush1.bf16.msra.mxu0 0
    %760 = vmatprep.subr.bf16.mxu0 0
    %761 = vmatpush1.bf16.msra.mxu0 0
    %762 = vmatprep.subr.bf16.mxu0 0
    %763 = vmatpush1.bf16.msra.mxu0 0
    %764 = vmatprep.subr.bf16.mxu0 0
    %765 = vmatpush1.bf16.msra.mxu0 0
    %766 = vmatprep.subr.bf16.mxu0 0
    %767 = vmatpush1.bf16.msra.mxu0 0
    %768 = vmatprep.subr.bf16.mxu0 0
    %769 = vmatpush1.bf16.msra.mxu0 0
    %770 = vmatprep.subr.bf16.mxu0 0
    %771 = vmatpush1.bf16.msra.mxu0 %v752
    %772 = vmatprep.subr.bf16.mxu0 0
    %773 = vmatpush1.bf16.msra.mxu0 %v751
    %774 = vmatprep.subr.bf16.mxu0 0
    %775 = vmatpush2.bf16.msra.mxu0 0
    %776 = vmatprep.subr.bf16.mxu0 0
    %777 = vmatpush2.bf16.msra.mxu0 0
    %778 = vmatprep.subr.bf16.mxu0 0
    %779 = vmatpush2.bf16.msra.mxu0 0
    %780 = vmatprep.subr.bf16.mxu0 0
    %781 = vmatpush2.bf16.msra.mxu0 0
    %782 = vmatprep.subr.bf16.mxu0 0
    %783 = vmatpush2.bf16.msra.mxu0 0
    %784 = vmatprep.subr.bf16.mxu0 0
    %785 = vmatpush2.bf16.msra.mxu0 0
    %786 = vmatprep.subr.bf16.mxu0 0
    %787 = vmatpush2.bf16.msra.mxu0 0
    %788 = vmatprep.subr.bf16.mxu0 0
    %789 = vmatpush2.bf16.msra.mxu0 0
    %790 = vmatprep.mubr.bf16.mxu0 0
    %791 = vmatmul.mubr.bf16.gmra.mxu0 %v756
    %v792 = vpop.f32.mrf.mxu0
    %v793 = vadd.f32 %v741, %v792
    %v794 = vpop.f32.mrf.mxu0
    %v795 = vpop.f32.mrf.mxu0
    %v796 = vadd.f32 %v741, %v795
    %v797 = vpop.f32.mrf.mxu0
    %798 = vdwg.mxu0
    %v799 = vmax.f32 %v793, 0.0
    %v800 = vmax.f32 %v796, 0.0
    %v801 = vpack.c.bf16 %v800, %v799
    %v802 = vld [vmem:[%s12] sm:$0xf]
    %v803 = vld [vmem:[%s12 + $0x4] sm:$0xf]
    %v804 = vld [vmem:[%s12 + $0x8] sm:$0xf]
    %v805 = vld [vmem:[%s12 + $0xc] sm:$0xf]
    %v806 = vld [vmem:[%s12 + $0x10] sm:$0xf]
    %v807 = vld [vmem:[%s12 + $0x14] sm:$0xf]
    %v808 = vld [vmem:[%s12 + $0x18] sm:$0xf]
    %v809 = vld [vmem:[%s12 + $0x1c] sm:$0xf]
    %v810 = vld [vmem:[%s13] sm:$0x1]
    %v812 = vlaneseq
    %v813 = vshrl.u32 %v812, 7
    %v814 = vsub.s32 0, %v813
    %v815 = vrot.slane %v810, %v814
    %v825 = vunpack.c.l.b16 %v802
    %v826 = vunpack.c.l.b16 %v803
    %v827 = vunpack.c.l.b16 %v804
    %v828 = vunpack.c.l.b16 %v805
    %v829 = vunpack.c.l.b16 %v806
    %v830 = vunpack.c.l.b16 %v807
    %v831 = vunpack.c.l.b16 %v808
    %v832 = vunpack.c.l.b16 %v809
    %v833 = vpack.c.b16 %v826, %v825
    %v834 = vpack.c.b16 %v828, %v827
    %v835 = vpack.c.b16 %v830, %v829
    %v836 = vpack.c.b16 %v832, %v831
    %vm841 = vcmask 523264
    %v843 = vsel %vm841, %v801, 0
    %845 = vmatprep.subr.bf16.mxu0 0
    %846 = vmatpush1.bf16.msra.mxu0 0
    %847 = vmatprep.subr.bf16.mxu0 0
    %848 = vmatpush1.bf16.msra.mxu0 0
    %849 = vmatprep.subr.bf16.mxu0 0
    %850 = vmatpush1.bf16.msra.mxu0 0
    %851 = vmatprep.subr.bf16.mxu0 0
    %852 = vmatpush1.bf16.msra.mxu0 0
    %853 = vmatprep.subr.bf16.mxu0 0
    %854 = vmatpush1.bf16.msra.mxu0 %v836
    %855 = vmatprep.subr.bf16.mxu0 0
    %856 = vmatpush1.bf16.msra.mxu0 %v835
    %857 = vmatprep.subr.bf16.mxu0 0
    %858 = vmatpush1.bf16.msra.mxu0 %v834
    %859 = vmatprep.subr.bf16.mxu0 0
    %860 = vmatpush1.bf16.msra.mxu0 %v833
    %861 = vmatprep.subr.bf16.mxu0 0
    %862 = vmatpush2.bf16.msra.mxu0 0
    %863 = vmatprep.subr.bf16.mxu0 0
    %864 = vmatpush2.bf16.msra.mxu0 0
    %865 = vmatprep.subr.bf16.mxu0 0
    %866 = vmatpush2.bf16.msra.mxu0 0
    %867 = vmatprep.subr.bf16.mxu0 0
    %868 = vmatpush2.bf16.msra.mxu0 0
    %869 = vmatprep.subr.bf16.mxu0 0
    %870 = vmatpush2.bf16.msra.mxu0 0
    %871 = vmatprep.subr.bf16.mxu0 0
    %872 = vmatpush2.bf16.msra.mxu0 0
    %873 = vmatprep.subr.bf16.mxu0 0
    %874 = vmatpush2.bf16.msra.mxu0 0
    %875 = vmatprep.subr.bf16.mxu0 0
    %876 = vmatpush2.bf16.msra.mxu0 0
    %877 = vmatprep.mubr.bf16.mxu0 0
    %878 = vmatmul.mubr.bf16.gmra.mxu0 %v843
    %v879 = vpop.f32.mrf.mxu0
    %v880 = vadd.f32 %v815, %v879
    %v881 = vpop.f32.mrf.mxu0
    %v882 = vpop.f32.mrf.mxu0
    %v883 = vadd.f32 %v815, %v882
    %v884 = vpop.f32.mrf.mxu0
    %885 = vdwg.mxu0
    %v886 = vadd.f32 %v729, %v880
    %v887 = vadd.f32 %v730, %v883
    %v888 = vld [vmem:[#allocation5] sm:$0x1]
    %v889 = vld [vmem:[#allocation7] sm:$0x1]
    %v890 = vsel %vm99, %v886, 0.0
    %891 = vadd.xlane.f32.xlu0 %v890
    %v892 = vpop.xlane.xlu0 %891
    %v893 = vsel %vm99, %v887, 0.0
    %894 = vadd.xlane.f32.xlu0 %v893
    %v895 = vpop.xlane.xlu0 %894
    %v896 = vmul.f32 %v892, %v106
    %v897 = vmul.f32 %v895, %v106
    %v898 = vsub.f32 %v886, %v896
    %v899 = vsub.f32 %v887, %v897
    %v900 = vmul.f32 %v898, %v898
    %v901 = vmul.f32 %v899, %v899
    %v902 = vsel %vm99, %v900, 0.0
    %903 = vadd.xlane.f32.xlu0 %v902
    %v904 = vpop.xlane.xlu0 %903
    %v905 = vsel %vm99, %v901, 0.0
    %906 = vadd.xlane.f32.xlu0 %v905
    %v907 = vpop.xlane.xlu0 %906
    %v908 = vmul.f32 %v904, %v106
    %v909 = vmul.f32 %v907, %v106
    %v910 = vadd.f32 %v908, 1e-05
    %v911 = vadd.f32 %v909, 1e-05
    %v912 = vrsqrt.pop %v910
    %v913 = vrsqrt.pop %v911
    %v914 = vmul.f32 %v898, %v912
    %v915 = vmul.f32 %v899, %v913
    %v917 = vlaneseq
    %v918 = vshrl.u32 %v917, 7
    %v919 = vsub.s32 0, %v918
    %v920 = vrot.slane %v888, %v919
    %v922 = vmul.f32 %v914, %v920
    %v923 = vmul.f32 %v915, %v920
    %v925 = vlaneseq
    %v926 = vshrl.u32 %v925, 7
    %v927 = vsub.s32 0, %v926
    %v928 = vrot.slane %v889, %v927
    %v930 = vadd.f32 %v922, %v928
    %v931 = vadd.f32 %v923, %v928
    %932 = vst.msk [vmem:[#allocation8] sm:$0xff] %vm99, %v930
    %933 = vst.msk [vmem:[#allocation8 + $0x8] sm:$0xff] %vm99, %v931
    // Predicated region
    $region78: #{transformer_encoder_forward.1} parent=1 // pred_check
      _
    $region79: #{transformer_encoder_forward.1} parent=1 // pred_check_branch
      %935 = sbr.rel (0) target = $region81
    $region80: #{transformer_encoder_forward.1} parent=1 // pred_region
      %s937 = ssub.s32 256, 256
      %938 = vsyncadd [#allocation4], %s937
      %s939 = sshll.u32 [#allocation8], 4
      %s940 = int_to_ptr.vmem [resolvable:$true] %s939
      %945 = dma.vmem_to_hbm [thread:$0]  %s940, 256, %s16, [#allocation4], 128, 128, 8
    $region81: #{transformer_encoder_forward.1} parent=1 // pred_fallthru
      _
    // Predicated region
    $region82: #{transformer_encoder_forward.1} parent=1 // pred_check
      _
    $region83: #{transformer_encoder_forward.1} parent=1 // pred_check_branch
      %947 = sbr.rel (0) target = $region85
    $region84: #{transformer_encoder_forward.1} parent=1 // pred_region
      %948 = dma.done [#allocation4], 256
    $region85: #{transformer_encoder_forward.1} parent=1 // pred_fallthru
      _
    %949 = vsyncpa [#allocation3], 1
    %950 = vsyncpa [#allocation6], 1
    %951 = vsyncpa [#allocation4], 1

</llo_original>
